<compile_context>
chip_gen: v7x
topology: tpu7x:2x2x1
jax: 0.10.0
libtpu: 0.0.40
codegen_flags: <defaults>
</compile_context>

<pallas_src>
import functools

import jax
import jax.numpy as jnp
from jax import lax
from jax.experimental import pallas as pl
from jax.experimental.pallas import tpu as pltpu


# ----------------------------------------------------------------------------
# Pallas kernel: single-K-tile GEMM + (bias | batchnorm) + LeakyReLU/Sigmoid
# ----------------------------------------------------------------------------
def gemm_bn_act_kernel(x_ref, w_ref, scale_ref, shift_ref, o_ref, *,
                       use_bn, act, eps):
    # x_ref: (tm, K) bf16   w_ref: (K, tn) bf16   scale/shift: (1, tn) f32
    # o_ref: (tm, tn) bf16
    acc = jnp.dot(x_ref[...], w_ref[...], preferred_element_type=jnp.float32)

    if use_bn:
        # Training-mode BatchNorm2d over all M = B*Ho*Wo rows of this channel
        # tile.  Two-pass (mean, then centered variance) in f32, folded into a
        # single scale/shift sweep.
        inv_m = 1.0 / acc.shape[0]
        mean = jnp.sum(acc, axis=0, keepdims=True) * inv_m
        centered = acc - mean
        var = jnp.sum(centered * centered, axis=0, keepdims=True) * inv_m
        scale = scale_ref[...] * lax.rsqrt(var + eps)       # gamma / sqrt(var+eps)
        shift = shift_ref[...] - mean * scale               # beta - mean*scale
    else:
        scale = scale_ref[...]        # ones
        shift = shift_ref[...]        # conv bias

    acc = acc * scale + shift

    if act == "lrelu":
        acc = jnp.where(acc > 0, acc, 0.2 * acc)            # LeakyReLU(0.2)
    elif act == "sigmoid":
        acc = jax.nn.sigmoid(acc)

    o_ref[...] = acc.astype(o_ref.dtype)


# ----------------------------------------------------------------------------
# im2col via strided slices (no gathers); feature order (kh, kw, cin)
# ----------------------------------------------------------------------------
def im2col(x_nhwc, k, stride, pad):
    B, H, W, C = x_nhwc.shape
    xp = jnp.pad(x_nhwc, ((0, 0), (pad, pad), (pad, pad), (0, 0)))
    Ho = (H + 2 * pad - k) // stride + 1
    Wo = (W + 2 * pad - k) // stride + 1
    pieces = []
    for kh in range(k):
        for kw in range(k):
            s = lax.slice(
                xp,
                (0, kh, kw, 0),
                (B, kh + (Ho - 1) * stride + 1, kw + (Wo - 1) * stride + 1, C),
                (1, stride, stride, 1))
            pieces.append(s)                       # (B, Ho, Wo, C)
    p = jnp.concatenate(pieces, axis=-1)           # (B, Ho, Wo, k*k*C)
    return p.reshape(B * Ho * Wo, k * k * C), Ho, Wo


# ----------------------------------------------------------------------------
# One fused conv layer (conv -> bias/bn -> activation) via pallas_call
# ----------------------------------------------------------------------------
def fused_conv(x_nhwc, w, scale, shift, *, stride, pad, use_bn, act):
    k, _, cin, cout = w.shape
    patches, Ho, Wo = im2col(x_nhwc.astype(jnp.bfloat16), k, stride, pad)
    M, K = patches.shape
    w2d = w.reshape(k * k * cin, cout).astype(jnp.bfloat16)

    # Single K tile per layer; N tiled so layers 2-4 keep >= 2 "parallel"
    # blocks (v7x megacore) while weight blocks stay big (fewer grid steps,
    # longer uninterrupted weight DMA bursts).  Layer-4 weight block
    # (8192, 512) bf16 = 8 MiB, x2 buffers = 16 MiB -> needs the explicit
    # vmem_limit bump below on v5e.
    if cout <= 256:
        tn = 128
    elif cout == 512:
        tn = 256
    else:
        tn = 512
    # Tile M only when BN is off (layer 1): BN needs all M rows in one block
    # for in-kernel batch statistics; layer 1 gets 2 parallel M tiles instead.
    tm = M if (use_bn or M <= 1024) else 1024
    assert cout % tn == 0 and M % tm == 0
    grid = (M // tm, cout // tn)

    kernel = functools.partial(gemm_bn_act_kernel, use_bn=use_bn, act=act,
                               eps=1e-5)

    flops = 2 * M * K * cout
    bytes_accessed = (M * K + K * cout + M * cout) * 2 + 2 * cout * 4
    transcendentals = M * cout if act == "sigmoid" else 0

    out = pl.pallas_call(
        kernel,
        out_shape=jax.ShapeDtypeStruct((M, cout), jnp.bfloat16),
        grid=grid,
        in_specs=[
            pl.BlockSpec((tm, K), lambda m, n: (m, 0)),     # patches
            pl.BlockSpec((K, tn), lambda m, n: (0, n)),     # weight tile
            pl.BlockSpec((1, tn), lambda m, n: (0, n)),     # scale (gamma/ones)
            pl.BlockSpec((1, tn), lambda m, n: (0, n)),     # shift (beta/bias)
        ],
        out_specs=pl.BlockSpec((tm, tn), lambda m, n: (m, n)),
        compiler_params=pltpu.CompilerParams(
            dimension_semantics=("parallel", "parallel"),
            vmem_limit_bytes=32 * 1024 * 1024),
        cost_estimate=pl.CostEstimate(
            flops=flops, transcendentals=transcendentals,
            bytes_accessed=bytes_accessed),
    )(patches, w2d,
      scale.reshape(1, cout).astype(jnp.float32),
      shift.reshape(1, cout).astype(jnp.float32))

    return out.reshape(x_nhwc.shape[0], Ho, Wo, cout)


# ----------------------------------------------------------------------------
# Full discriminator forward (input NCHW, output NCHW (B,1,1,1) like PyTorch)
# ----------------------------------------------------------------------------
def dcgan_discriminator(x_nchw, p):
    x = jnp.transpose(x_nchw, (0, 2, 3, 1)).astype(jnp.bfloat16)  # NCHW -> NHWC

    # Layer 1: zero-pad cin 3 -> 8 (both input and weights) so K = 4*4*8 = 128
    # is lane-dense; padded channels contribute exactly zero.
    x = jnp.pad(x, ((0, 0), (0, 0), (0, 0), (0, 5)))
    w1 = jnp.pad(p["w1"], ((0, 0), (0, 0), (0, 5), (0, 0)))
    x = fused_conv(x, w1, jnp.ones((128,), jnp.float32), p["b1"],
                   stride=2, pad=1, use_bn=False, act="lrelu")

    # l2..l4: conv (bias=False) + BN (batch stats) + LeakyReLU
    x = fused_conv(x, p["w2"], p["g2"], p["bt2"],
                   stride=2, pad=1, use_bn=True, act="lrelu")
    x = fused_conv(x, p["w3"], p["g3"], p["bt3"],
                   stride=2, pad=1, use_bn=True, act="lrelu")
    x = fused_conv(x, p["w4"], p["g4"], p["bt4"],
                   stride=2, pad=1, use_bn=True, act="lrelu")

    # l5: 4x4 valid conv, stride 1, cout=1 over a 4x4 map == one dot per batch
    # element.  Plain XLA dot (a standalone pallas_call with N=1 is pure
    # launch / masked-store overhead).
    B = x.shape[0]
    w5 = p["w5"].reshape(-1, 1).astype(jnp.bfloat16)        # (4*4*1024, 1), HWIO order
    logits = jnp.dot(x.reshape(B, -1), w5,
                     preferred_element_type=jnp.float32) + p["b5"]
    out = jax.nn.sigmoid(logits)                            # (B, 1) f32
    return out.reshape(B, 1, 1, 1)                          # NCHW == NHWC here


def init_params(key):
    ks = jax.random.split(key, 6)

    def conv_w(k, kh, kw, cin, cout):
        return 0.05 * jax.random.normal(k, (kh, kw, cin, cout), jnp.float32)

    return {
        "w1": conv_w(ks[0], 4, 4, 3, 128),
        "b1": 0.01 * jax.random.normal(ks[5], (128,), jnp.float32),
        "w2": conv_w(ks[1], 4, 4, 128, 256),
        "g2": jnp.ones((256,), jnp.float32),  "bt2": jnp.zeros((256,), jnp.float32),
        "w3": conv_w(ks[2], 4, 4, 256, 512),
        "g3": jnp.ones((512,), jnp.float32),  "bt3": jnp.zeros((512,), jnp.float32),
        "w4": conv_w(ks[3], 4, 4, 512, 1024),
        "g4": jnp.ones((1024,), jnp.float32), "bt4": jnp.zeros((1024,), jnp.float32),
        "w5": conv_w(ks[4], 4, 4, 1024, 1),
        "b5": jnp.zeros((1,), jnp.float32),
    }


if __name__ == "__main__":
    key = jax.random.PRNGKey(0)
    k_x, k_p = jax.random.split(key)
    # The architecture (4 stride-2 convs + final 4x4 valid conv) requires
    # 3x64x64 inputs to produce a 1x1 logit map; batch kept small.
    x = jax.random.normal(k_x, (2, 3, 64, 64), jnp.float32)
    params = init_params(k_p)

    out = dcgan_discriminator(x, params)
    out = jax.block_until_ready(out)

    assert out.shape == (2, 1, 1, 1), out.shape
    assert bool(jnp.all(jnp.isfinite(out)))
    assert bool(jnp.all((out >= 0.0) & (out <= 1.0)))  # sigmoid range
    print("KERNEL_OK")
</pallas_src>

<mosaic_0001>
module attributes {stable_mosaic.version = 11 : i64} {
  func.func @gemm_bn_act_kernel(%arg0: i32, %arg1: i32, %arg2: memref<1024x128xbf16, #tpu.memory_space<vmem>>, %arg3: memref<128x128xbf16, #tpu.memory_space<vmem>>, %arg4: memref<1x128xf32, #tpu.memory_space<vmem>>, %arg5: memref<1x128xf32, #tpu.memory_space<vmem>>, %arg6: memref<1024x128xbf16, #tpu.memory_space<vmem>>) attributes {dimension_semantics = [#tpu.dimension_semantics<parallel>, #tpu.dimension_semantics<parallel>], iteration_bounds = array<i64: 2, 1>, scalar_prefetch = 0 : i64, scratch_operands = 0 : i64, tpu.core_type = #tpu.core_type<tc>, window_params = [{transform_indices = @transform_0, window_bounds = array<i64: 1024, 128>}, {transform_indices = @transform_1, window_bounds = array<i64: 128, 128>}, {transform_indices = @transform_2, window_bounds = array<i64: 1, 128>}, {transform_indices = @transform_3, window_bounds = array<i64: 1, 128>}, {transform_indices = @transform_4, window_bounds = array<i64: 1024, 128>}]} {
    %c0 = arith.constant 0 : index
    %c0_0 = arith.constant 0 : index
    %0 = vector.load %arg2[%c0, %c0_0] : memref<1024x128xbf16, #tpu.memory_space<vmem>>, vector<1024x128xbf16>
    %c0_1 = arith.constant 0 : index
    %c0_2 = arith.constant 0 : index
    %1 = vector.load %arg3[%c0_1, %c0_2] : memref<128x128xbf16, #tpu.memory_space<vmem>>, vector<128x128xbf16>
    %cst = arith.constant dense<0.000000e+00> : vector<1024x128xf32>
    %2 = tpu.matmul %0, %1, %cst {dimension_numbers = #tpu.dot_dimension_numbers<[1], [0], [0], [1], [0, 0, 1, 1], [], []>} : vector<1024x128xbf16>, vector<128x128xbf16>, vector<1024x128xf32> -> vector<1024x128xf32>
    %c0_3 = arith.constant 0 : index
    %c0_4 = arith.constant 0 : index
    %3 = vector.load %arg4[%c0_3, %c0_4] : memref<1x128xf32, #tpu.memory_space<vmem>>, vector<1x128xf32>
    %c0_5 = arith.constant 0 : index
    %c0_6 = arith.constant 0 : index
    %4 = vector.load %arg5[%c0_5, %c0_6] : memref<1x128xf32, #tpu.memory_space<vmem>>, vector<1x128xf32>
    %5 = vector.broadcast %3 : vector<1x128xf32> to vector<1024x128xf32>
    %6 = arith.mulf %2, %5 : vector<1024x128xf32>
    %7 = vector.broadcast %4 : vector<1x128xf32> to vector<1024x128xf32>
    %8 = arith.addf %6, %7 : vector<1024x128xf32>
    %cst_7 = arith.constant 0.000000e+00 : f32
    %9 = vector.broadcast %cst_7 : f32 to vector<1024x128xf32>
    %10 = arith.cmpf ogt, %8, %9 : vector<1024x128xf32>
    %cst_8 = arith.constant 2.000000e-01 : f32
    %11 = vector.broadcast %cst_8 : f32 to vector<1024x128xf32>
    %12 = arith.mulf %11, %8 : vector<1024x128xf32>
    %13 = arith.select %10, %8, %12 : vector<1024x128xi1>, vector<1024x128xf32>
    %14 = arith.truncf %13 : vector<1024x128xf32> to vector<1024x128xbf16>
    %c0_9 = arith.constant 0 : index
    %c0_10 = arith.constant 0 : index
    %15 = vector.load %arg6[%c0_9, %c0_10] : memref<1024x128xbf16, #tpu.memory_space<vmem>>, vector<1024x128xbf16>
    tpu.vector_store %arg6[%c0_9, %c0_10], %14 {strides = array<i32>} : memref<1024x128xbf16, #tpu.memory_space<vmem>>, vector<1024x128xbf16>,
    return
  }
  func.func @transform_0(%arg0: i32, %arg1: i32) -> (i32, i32) {
    %c0_i32 = arith.constant 0 : i32
    %c0_i32_0 = arith.constant 0 : i32
    return %arg0, %c0_i32 : i32, i32
  }
  func.func @transform_1(%arg0: i32, %arg1: i32) -> (i32, i32) {
    %c0_i32 = arith.constant 0 : i32
    %c0_i32_0 = arith.constant 0 : i32
    return %c0_i32, %arg1 : i32, i32
  }
  func.func @transform_2(%arg0: i32, %arg1: i32) -> (i32, i32) {
    %c0_i32 = arith.constant 0 : i32
    %c0_i32_0 = arith.constant 0 : i32
    return %c0_i32, %arg1 : i32, i32
  }
  func.func @transform_3(%arg0: i32, %arg1: i32) -> (i32, i32) {
    %c0_i32 = arith.constant 0 : i32
    %c0_i32_0 = arith.constant 0 : i32
    return %c0_i32, %arg1 : i32, i32
  }
  func.func @transform_4(%arg0: i32, %arg1: i32) -> (i32, i32) {
    %c0_i32 = arith.constant 0 : i32
    return %arg0, %arg1 : i32, i32
  }
}

</mosaic_0001>

<llo_original>
// kernel: tpu_custom_call.1
$region0: #{tpu_custom_call.1}
  #allocation0 [shape = 'u32[]', space=smem, size = 0x4, offset = 0x4, fixed_abs, tag = 'smem constant byte address 0x4 - core index']
  #allocation1 [shape = 'u32[144,128]{1,0:T(1,128)}', space=vmem, size = 0x12000, scoped, tag = 'internal scratch']
  %s0 = inlined_call_operand.hbm [shape: bf16[2048,128], index: 0, kind: input, shape index: {}]
  %s1 = inlined_call_operand.hbm [shape: bf16[128,128], index: 1, kind: input, shape index: {}]
  %s2 = inlined_call_operand.vmem [shape: f32[1,128], index: 2, kind: input, shape index: {}]
  %s3 = inlined_call_operand.vmem [shape: f32[1,128], index: 3, kind: input, shape index: {}]
  %s4 = inlined_call_operand.hbm [shape: bf16[2048,128], index: 4, kind: output, shape index: {}]
  %s5 = sld [smem:[#allocation0]]
  $region57: #{tpu_custom_call.1} parent=0
    _
  %s7 = ssub.s32 1, %s5
  %s8 = scalar_select 0, %s7, %s5
  $region1: #{tpu_custom_call.1} parent=0
    #allocation2 [shape = 'u8[524288]{0}', space=vmem, size = 0x80000, scoped, tag = 'input window, operand 0']
    #allocation3 [shape = 's32[2]{0}', space=sflag, size = 0x8, scoped, tag = 'scoped memory for tpu_custom_call.1']
    #allocation4 [shape = 's32[2]{0}', space=sflag, size = 0x8, scoped, tag = 'scoped memory for tpu_custom_call.1']
    #allocation5 [shape = 'u8[32768]{0}', space=vmem, size = 0x8000, scoped, tag = 'input window, operand 1, single buffered']
    #allocation6 [shape = 's32[1]{0}', space=sflag, size = 0x4, scoped, tag = 'scoped memory for tpu_custom_call.1']
    #allocation7 [shape = 'u8[524288]{0}', space=vmem, size = 0x80000, scoped, tag = 'output window, operand 0']
    %9 = vsyncpa [#allocation3], 0
    %s10 = scalar_lea.sflag [#allocation3], 1
    %11 = vsyncpa %s10, 0
    %12 = vsyncpa [#allocation6], 0
    %13 = vsyncpa [#allocation4], 0
    %s14 = scalar_lea.sflag [#allocation4], 1
    %15 = vsyncpa %s14, 0
    loop: start=0, step=1, limit=4
    $region2: #{tpu_custom_call.1} parent=1 // loop_pre_header
      _
    $region3: #{tpu_custom_call.1} parent=1 // loop_header
      %s17 = sphi 0, %s21
      %p18 = scmp.ge.s32.totalorder %s17, 4
      %s24 = sphi 0, %s36
      %s25 = sphi 0, %s32
      %s26 = sphi 0, %s24
      %s27 = sphi 0, %s25
      %s28 = sphi 0, %s26
      %s29 = sphi 0, %s27
      %s39 = sphi 0, %s41
      %s42 = sphi 0, %s39
      %s43 = sphi 0, %s42
      %s59 = sphi 0, %s43
      %s65 = sphi 0, %s67
      %s68 = sphi 0, %s65
      %s69 = sphi 0, %s68
      %s85 = sphi 0, %s69
      %s91 = sphi 0, %s93
      %s94 = sphi 0, %s91
      %s95 = sphi 0, %s94
      %s111 = sphi 0, %s95
      %s117 = sphi 0, %s119
      %s120 = sphi 0, %s117
      %s121 = sphi 0, %s120
      %s137 = sphi 0, %s121
      %s145 = sphi 0, %s147
      %s148 = sphi 0, %s145
      %s149 = sphi 0, %s148
      %s165 = sphi 0, %s149
    $region4: #{tpu_custom_call.1} parent=1 // loop_header_branch
      %20 = sbr.rel (%p18) target = $region8
    $region5: #{tpu_custom_call.1} parent=1 // loop_body
      %s22 = ssub.s32 %s17, 1
      %s23 = ssub.s32 %s17, 2
      %s30 = sadd.s32 1, %s25
      %p31 = scmp.ge.s32.totalorder %s30, 1
      %s32 = scalar_select %p31, 0, %s30
      %s33 = sadd.s32 1, %s24
      %s34 = scalar_select %p31, %s33, %s24
      %p35 = scmp.ge.s32.totalorder %s34, 2
      %s36 = scalar_select %p35, 0, %s34
      %s37 = ssub.s32 %s24, %s36
      %p38 = scmp.eq.s32.totalorder %s37, 0
      %s40 = sadd.s32 %s39, 1
      %s41 = scalar_select %p38, %s39, %s40
      %p44 = pneg %p38
      %p45 = scmp.eq.s32.totalorder %s17, 1
      %p46 = por %p44, %p45
      %p47 = scmp.ne.s32.totalorder %s39, %s42
      %p48 = scmp.eq.s32.totalorder %s17, 0
      %p49 = por %p47, %p48
      %p50 = scmp.ne.s32.totalorder %s39, %s42
      %p51 = scmp.eq.s32.totalorder %s22, 1
      %p52 = por %p50, %p51
      %p53 = scmp.ne.s32.totalorder %s42, %s43
      %p54 = scmp.eq.s32.totalorder %s22, 0
      %p55 = por %p53, %p54
      %p56 = scmp.ne.s32.totalorder %s42, %s43
      %p57 = scmp.eq.s32.totalorder %s23, 1
      %p58 = por %p56, %p57
      %p60 = scmp.ne.s32.totalorder %s43, %s59
      %p61 = scmp.eq.s32.totalorder %s23, 0
      %p62 = por %p60, %p61
      %s63 = ssub.s32 %s25, %s32
      %p64 = scmp.eq.s32.totalorder %s63, 0
      %s66 = sadd.s32 %s65, 1
      %s67 = scalar_select %p64, %s65, %s66
      %p70 = pneg %p64
      %p71 = scmp.eq.s32.totalorder %s17, 1
      %p72 = por %p70, %p71
      %p73 = scmp.ne.s32.totalorder %s65, %s68
      %p74 = scmp.eq.s32.totalorder %s17, 0
      %p75 = por %p73, %p74
      %p76 = scmp.ne.s32.totalorder %s65, %s68
      %p77 = scmp.eq.s32.totalorder %s22, 1
      %p78 = por %p76, %p77
      %p79 = scmp.ne.s32.totalorder %s68, %s69
      %p80 = scmp.eq.s32.totalorder %s22, 0
      %p81 = por %p79, %p80
      %p82 = scmp.ne.s32.totalorder %s68, %s69
      %p83 = scmp.eq.s32.totalorder %s23, 1
      %p84 = por %p82, %p83
      %p86 = scmp.ne.s32.totalorder %s69, %s85
      %p87 = scmp.eq.s32.totalorder %s23, 0
      %p88 = por %p86, %p87
      %s89 = ssub.s32 %s25, %s32
      %p90 = scmp.eq.s32.totalorder %s89, 0
      %s92 = sadd.s32 %s91, 1
      %s93 = scalar_select %p90, %s91, %s92
      %p96 = pneg %p90
      %p97 = scmp.eq.s32.totalorder %s17, 1
      %p98 = por %p96, %p97
      %p99 = scmp.ne.s32.totalorder %s91, %s94
      %p100 = scmp.eq.s32.totalorder %s17, 0
      %p101 = por %p99, %p100
      %p102 = scmp.ne.s32.totalorder %s91, %s94
      %p103 = scmp.eq.s32.totalorder %s22, 1
      %p104 = por %p102, %p103
      %p105 = scmp.ne.s32.totalorder %s94, %s95
      %p106 = scmp.eq.s32.totalorder %s22, 0
      %p107 = por %p105, %p106
      %p108 = scmp.ne.s32.totalorder %s94, %s95
      %p109 = scmp.eq.s32.totalorder %s23, 1
      %p110 = por %p108, %p109
      %p112 = scmp.ne.s32.totalorder %s95, %s111
      %p113 = scmp.eq.s32.totalorder %s23, 0
      %p114 = por %p112, %p113
      %s115 = ssub.s32 %s25, %s32
      %p116 = scmp.eq.s32.totalorder %s115, 0
      %s118 = sadd.s32 %s117, 1
      %s119 = scalar_select %p116, %s117, %s118
      %p122 = pneg %p116
      %p123 = scmp.eq.s32.totalorder %s17, 1
      %p124 = por %p122, %p123
      %p125 = scmp.ne.s32.totalorder %s117, %s120
      %p126 = scmp.eq.s32.totalorder %s17, 0
      %p127 = por %p125, %p126
      %p128 = scmp.ne.s32.totalorder %s117, %s120
      %p129 = scmp.eq.s32.totalorder %s22, 1
      %p130 = por %p128, %p129
      %p131 = scmp.ne.s32.totalorder %s120, %s121
      %p132 = scmp.eq.s32.totalorder %s22, 0
      %p133 = por %p131, %p132
      %p134 = scmp.ne.s32.totalorder %s120, %s121
      %p135 = scmp.eq.s32.totalorder %s23, 1
      %p136 = por %p134, %p135
      %p138 = scmp.ne.s32.totalorder %s121, %s137
      %p139 = scmp.eq.s32.totalorder %s23, 0
      %p140 = por %p138, %p139
      %s141 = ssub.s32 %s24, %s36
      %s142 = ssub.s32 %s25, %s32
      %s143 = sor.u32 %s141, %s142
      %p144 = scmp.eq.s32.totalorder %s143, 0
      %s146 = sadd.s32 %s145, 1
      %s147 = scalar_select %p144, %s145, %s146
      %p150 = pneg %p144
      %p151 = scmp.eq.s32.totalorder %s17, 1
      %p152 = por %p150, %p151
      %p153 = scmp.ne.s32.totalorder %s145, %s148
      %p154 = scmp.eq.s32.totalorder %s17, 0
      %p155 = por %p153, %p154
      %p156 = scmp.ne.s32.totalorder %s145, %s148
      %p157 = scmp.eq.s32.totalorder %s22, 1
      %p158 = por %p156, %p157
      %p159 = scmp.ne.s32.totalorder %s148, %s149
      %p160 = scmp.eq.s32.totalorder %s22, 0
      %p161 = por %p159, %p160
      %p162 = scmp.ne.s32.totalorder %s148, %s149
      %p163 = scmp.eq.s32.totalorder %s23, 1
      %p164 = por %p162, %p163
      %p166 = scmp.ne.s32.totalorder %s149, %s165
      %p167 = scmp.eq.s32.totalorder %s23, 0
      %p168 = por %p166, %p167
      %p169 = scmp.le.s32.totalorder 1, %s17
      %p170 = scmp.lt.s32.totalorder %s17, 3
      %p171 = pnand %p169, %p170
      %p172 = pneg %p171
      // Predicated region
      $region9: #{tpu_custom_call.1} parent=5 // pred_check
        _
      $region10: #{tpu_custom_call.1} parent=5 // pred_check_branch
        %174 = sbr.rel (%p171) target = $region12
      $region11: #{tpu_custom_call.1} parent=5 // pred_region
        %s175 = ssub.s32 %s17, 1
        // Predicated region
        $region13: #{tpu_custom_call.1} parent=11 // pred_check
          %p176 = pneg %p81
        $region14: #{tpu_custom_call.1} parent=11 // pred_check_branch
          %178 = sbr.rel (%p176) target = $region16
        $region15: #{tpu_custom_call.1} parent=11 // pred_region
          %s180 = ssub.s32 1024, 1024
          %181 = vsyncadd [#allocation6], %s180
          %s182 = smul.addr %s27, 64
          %s183 = scalar_lea.hbm %s1, %s182
          %s184 = sshll.u32 [#allocation5], 4
          %s185 = int_to_ptr.vmem [resolvable:$true] %s184
          %190 = dma.hbm_to_vmem [thread:$0]  %s183, 1024, %s185, [#allocation6], 64, 64, 4
        $region16: #{tpu_custom_call.1} parent=11 // pred_fallthru
          _
        // Predicated region
        $region17: #{tpu_custom_call.1} parent=11 // pred_check
          %p191 = pneg %p107
        $region18: #{tpu_custom_call.1} parent=11 // pred_check_branch
          %193 = sbr.rel (%p191) target = $region20
        $region19: #{tpu_custom_call.1} parent=11 // pred_region
          %p194 = scmp.lt.s32.totalorder %s27, 0
          %s195 = scalar_select %p194, %s27, 0
          %s196 = scalar_lea.vmem %s2, %s195
        $region20: #{tpu_custom_call.1} parent=11 // pred_fallthru
          _
        // Predicated region
        $region21: #{tpu_custom_call.1} parent=11 // pred_check
          %p197 = pneg %p133
        $region22: #{tpu_custom_call.1} parent=11 // pred_check_branch
          %199 = sbr.rel (%p197) target = $region24
        $region23: #{tpu_custom_call.1} parent=11 // pred_region
          %p200 = scmp.lt.s32.totalorder %s27, 0
          %s201 = scalar_select %p200, %s27, 0
          %s202 = scalar_lea.vmem %s3, %s201
        $region24: #{tpu_custom_call.1} parent=11 // pred_fallthru
          _
      $region12: #{tpu_custom_call.1} parent=5 // pred_fallthru
        _
      %p203 = scmp.lt.s32.totalorder %s17, 2
      // Predicated region
      $region25: #{tpu_custom_call.1} parent=5 // pred_check
        %p204 = pneg %p203
      $region26: #{tpu_custom_call.1} parent=5 // pred_check_branch
        %206 = sbr.rel (%p204) target = $region28
      $region27: #{tpu_custom_call.1} parent=5 // pred_region
        // Predicated region
        $region29: #{tpu_custom_call.1} parent=27 // pred_check
          %p207 = pneg %p49
        $region30: #{tpu_custom_call.1} parent=27 // pred_check_branch
          %209 = sbr.rel (%p207) target = $region32
        $region31: #{tpu_custom_call.1} parent=27 // pred_region
          %s210 = sand.u32 %s39, 1
          %s211 = scalar_lea.sflag [#allocation3], %s210
          %s212 = sand.u32 %s39, 1
          %s213 = smul.addr %s212, 512
          %s214 = scalar_lea.vmem [#allocation2], %s213
          %s215 = smul.u32 128, %s24
          %s217 = ssub.s32 8192, 8192
          %218 = vsyncadd %s211, %s217
          %s219 = smul.addr %s215, 64
          %s220 = scalar_lea.hbm %s0, %s219
          %s221 = sshll.u32 %s214, 4
          %s222 = int_to_ptr.vmem [resolvable:$true] %s221
          %227 = dma.hbm_to_vmem [thread:$0]  %s220, 8192, %s222, %s211, 64, 64, 4
        $region32: #{tpu_custom_call.1} parent=27 // pred_fallthru
          _
      $region28: #{tpu_custom_call.1} parent=5 // pred_fallthru
        _
      %p228 = scmp.le.s32.totalorder 1, %s17
      %p229 = scmp.lt.s32.totalorder %s17, 3
      %p230 = pnand %p228, %p229
      %p231 = pneg %p230
      // Predicated region
      $region33: #{tpu_custom_call.1} parent=5 // pred_check
        _
      $region34: #{tpu_custom_call.1} parent=5 // pred_check_branch
        %233 = sbr.rel (%p230) target = $region36
      $region35: #{tpu_custom_call.1} parent=5 // pred_region
        %s234 = ssub.s32 %s17, 1
        %s235 = sand.u32 %s42, 1
        %s236 = scalar_lea.sflag [#allocation3], %s235
        %s237 = sand.u32 %s42, 1
        %s238 = smul.addr %s237, 512
        %s239 = scalar_lea.vmem [#allocation2], %s238
        // Predicated region
        $region37: #{tpu_custom_call.1} parent=35 // pred_check
          %p240 = pneg %p55
        $region38: #{tpu_custom_call.1} parent=35 // pred_check_branch
          %242 = sbr.rel (%p240) target = $region40
        $region39: #{tpu_custom_call.1} parent=35 // pred_region
          %243 = dma.done %s236, 8192
        $region40: #{tpu_custom_call.1} parent=35 // pred_fallthru
          _
        // Predicated region
        $region41: #{tpu_custom_call.1} parent=35 // pred_check
          %p244 = pneg %p81
        $region42: #{tpu_custom_call.1} parent=35 // pred_check_branch
          %246 = sbr.rel (%p244) target = $region44
        $region43: #{tpu_custom_call.1} parent=35 // pred_region
          %247 = dma.done [#allocation6], 1024
        $region44: #{tpu_custom_call.1} parent=35 // pred_fallthru
          _
        %s248 = sand.u32 %s42, 1
        %s249 = scalar_lea.sflag [#allocation3], %s248
        %s250 = sand.u32 %s42, 1
        %s251 = smul.addr %s250, 512
        %s252 = scalar_lea.vmem [#allocation2], %s251
        %p253 = pneg %p55
        %p254 = pneg %p52
        %p255 = pneg %p81
        %p256 = pneg %p78
        %p257 = scmp.lt.s32.totalorder %s27, 0
        %s258 = scalar_select %p257, %s27, 0
        %s259 = scalar_lea.vmem %s2, %s258
        %p260 = pneg %p107
        %p261 = pneg %p104
        %p262 = scmp.lt.s32.totalorder %s27, 0
        %s263 = scalar_select %p262, %s27, 0
        %s264 = scalar_lea.vmem %s3, %s263
        %p265 = pneg %p133
        %p266 = pneg %p130
        %p267 = pneg %p161
        %p268 = pneg %p158
        %s269 = sand.u32 %s148, 1
        %s270 = scalar_lea.sflag [#allocation4], %s269
        %s271 = sand.u32 %s148, 1
        %s272 = smul.addr %s271, 512
        %s273 = scalar_lea.vmem [#allocation7], %s272
        %s274 = smul.u32 128, %s26
        %p275 = scmp.lt.s32.totalorder %s27, 0
        %s276 = scalar_select %p275, %s27, 0
        %s277 = scalar_lea.vmem %s2, %s276
        %p278 = scmp.lt.s32.totalorder %s27, 0
        %s279 = scalar_select %p278, %s27, 0
        %s280 = scalar_lea.vmem %s3, %s279
        %s281 = smul.u32 128, %s26
        %v283 = vld [vmem:[%s239] sm:$0xf]
        %v284 = vld [vmem:[%s239 + $0x4] sm:$0xf]
        %v285 = vld [vmem:[%s239 + $0x8] sm:$0xf]
        %v286 = vld [vmem:[%s239 + $0xc] sm:$0xf]
        %v287 = vld [vmem:[%s239 + $0x10] sm:$0xf]
        %v288 = vld [vmem:[%s239 + $0x14] sm:$0xf]
        %v289 = vld [vmem:[%s239 + $0x18] sm:$0xf]
        %v290 = vld [vmem:[%s239 + $0x1c] sm:$0xf]
        %v291 = vld [vmem:[%s239 + $0x20] sm:$0xf]
        %v292 = vld [vmem:[%s239 + $0x24] sm:$0xf]
        %v293 = vld [vmem:[%s239 + $0x28] sm:$0xf]
        %v294 = vld [vmem:[%s239 + $0x2c] sm:$0xf]
        %v295 = vld [vmem:[%s239 + $0x30] sm:$0xf]
        %v296 = vld [vmem:[%s239 + $0x34] sm:$0xf]
        %v297 = vld [vmem:[%s239 + $0x38] sm:$0xf]
        %v298 = vld [vmem:[%s239 + $0x3c] sm:$0xf]
        %v299 = vld [vmem:[%s239 + $0x40] sm:$0xf]
        %v300 = vld [vmem:[%s239 + $0x44] sm:$0xf]
        %v301 = vld [vmem:[%s239 + $0x48] sm:$0xf]
        %v302 = vld [vmem:[%s239 + $0x4c] sm:$0xf]
        %v303 = vld [vmem:[%s239 + $0x50] sm:$0xf]
        %v304 = vld [vmem:[%s239 + $0x54] sm:$0xf]
        %v305 = vld [vmem:[%s239 + $0x58] sm:$0xf]
        %v306 = vld [vmem:[%s239 + $0x5c] sm:$0xf]
        %v307 = vld [vmem:[%s239 + $0x60] sm:$0xf]
        %v308 = vld [vmem:[%s239 + $0x64] sm:$0xf]
        %v309 = vld [vmem:[%s239 + $0x68] sm:$0xf]
        %v310 = vld [vmem:[%s239 + $0x6c] sm:$0xf]
        %v311 = vld [vmem:[%s239 + $0x70] sm:$0xf]
        %v312 = vld [vmem:[%s239 + $0x74] sm:$0xf]
        %v313 = vld [vmem:[%s239 + $0x78] sm:$0xf]
        %v314 = vld [vmem:[%s239 + $0x7c] sm:$0xf]
        %v315 = vld [vmem:[%s239 + $0x80] sm:$0xf]
        %v316 = vld [vmem:[%s239 + $0x84] sm:$0xf]
        %v317 = vld [vmem:[%s239 + $0x88] sm:$0xf]
        %v318 = vld [vmem:[%s239 + $0x8c] sm:$0xf]
        %v319 = vld [vmem:[%s239 + $0x90] sm:$0xf]
        %v320 = vld [vmem:[%s239 + $0x94] sm:$0xf]
        %v321 = vld [vmem:[%s239 + $0x98] sm:$0xf]
        %v322 = vld [vmem:[%s239 + $0x9c] sm:$0xf]
        %v323 = vld [vmem:[%s239 + $0xa0] sm:$0xf]
        %v324 = vld [vmem:[%s239 + $0xa4] sm:$0xf]
        %v325 = vld [vmem:[%s239 + $0xa8] sm:$0xf]
        %v326 = vld [vmem:[%s239 + $0xac] sm:$0xf]
        %v327 = vld [vmem:[%s239 + $0xb0] sm:$0xf]
        %v328 = vld [vmem:[%s239 + $0xb4] sm:$0xf]
        %v329 = vld [vmem:[%s239 + $0xb8] sm:$0xf]
        %v330 = vld [vmem:[%s239 + $0xbc] sm:$0xf]
        %v331 = vld [vmem:[%s239 + $0xc0] sm:$0xf]
        %v332 = vld [vmem:[%s239 + $0xc4] sm:$0xf]
        %v333 = vld [vmem:[%s239 + $0xc8] sm:$0xf]
        %v334 = vld [vmem:[%s239 + $0xcc] sm:$0xf]
        %v335 = vld [vmem:[%s239 + $0xd0] sm:$0xf]
        %v336 = vld [vmem:[%s239 + $0xd4] sm:$0xf]
        %v337 = vld [vmem:[%s239 + $0xd8] sm:$0xf]
        %v338 = vld [vmem:[%s239 + $0xdc] sm:$0xf]
        %v339 = vld [vmem:[%s239 + $0xe0] sm:$0xf]
        %v340 = vld [vmem:[%s239 + $0xe4] sm:$0xf]
        %v341 = vld [vmem:[%s239 + $0xe8] sm:$0xf]
        %v342 = vld [vmem:[%s239 + $0xec] sm:$0xf]
        %v343 = vld [vmem:[%s239 + $0xf0] sm:$0xf]
        %v344 = vld [vmem:[%s239 + $0xf4] sm:$0xf]
        %v345 = vld [vmem:[%s239 + $0xf8] sm:$0xf]
        %v346 = vld [vmem:[%s239 + $0xfc] sm:$0xf]
        %v347 = vld [vmem:[%s239 + $0x100] sm:$0xf]
        %v348 = vld [vmem:[%s239 + $0x104] sm:$0xf]
        %v349 = vld [vmem:[%s239 + $0x108] sm:$0xf]
        %v350 = vld [vmem:[%s239 + $0x10c] sm:$0xf]
        %v351 = vld [vmem:[%s239 + $0x110] sm:$0xf]
        %v352 = vld [vmem:[%s239 + $0x114] sm:$0xf]
        %v353 = vld [vmem:[%s239 + $0x118] sm:$0xf]
        %v354 = vld [vmem:[%s239 + $0x11c] sm:$0xf]
        %v355 = vld [vmem:[%s239 + $0x120] sm:$0xf]
        %v356 = vld [vmem:[%s239 + $0x124] sm:$0xf]
        %v357 = vld [vmem:[%s239 + $0x128] sm:$0xf]
        %v358 = vld [vmem:[%s239 + $0x12c] sm:$0xf]
        %v359 = vld [vmem:[%s239 + $0x130] sm:$0xf]
        %v360 = vld [vmem:[%s239 + $0x134] sm:$0xf]
        %v361 = vld [vmem:[%s239 + $0x138] sm:$0xf]
        %v362 = vld [vmem:[%s239 + $0x13c] sm:$0xf]
        %v363 = vld [vmem:[%s239 + $0x140] sm:$0xf]
        %v364 = vld [vmem:[%s239 + $0x144] sm:$0xf]
        %v365 = vld [vmem:[%s239 + $0x148] sm:$0xf]
        %v366 = vld [vmem:[%s239 + $0x14c] sm:$0xf]
        %v367 = vld [vmem:[%s239 + $0x150] sm:$0xf]
        %v368 = vld [vmem:[%s239 + $0x154] sm:$0xf]
        %v369 = vld [vmem:[%s239 + $0x158] sm:$0xf]
        %v370 = vld [vmem:[%s239 + $0x15c] sm:$0xf]
        %v371 = vld [vmem:[%s239 + $0x160] sm:$0xf]
        %v372 = vld [vmem:[%s239 + $0x164] sm:$0xf]
        %v373 = vld [vmem:[%s239 + $0x168] sm:$0xf]
        %v374 = vld [vmem:[%s239 + $0x16c] sm:$0xf]
        %v375 = vld [vmem:[%s239 + $0x170] sm:$0xf]
        %v376 = vld [vmem:[%s239 + $0x174] sm:$0xf]
        %v377 = vld [vmem:[%s239 + $0x178] sm:$0xf]
        %v378 = vld [vmem:[%s239 + $0x17c] sm:$0xf]
        %v379 = vld [vmem:[%s239 + $0x180] sm:$0xf]
        %v380 = vld [vmem:[%s239 + $0x184] sm:$0xf]
        %v381 = vld [vmem:[%s239 + $0x188] sm:$0xf]
        %v382 = vld [vmem:[%s239 + $0x18c] sm:$0xf]
        %v383 = vld [vmem:[%s239 + $0x190] sm:$0xf]
        %v384 = vld [vmem:[%s239 + $0x194] sm:$0xf]
        %v385 = vld [vmem:[%s239 + $0x198] sm:$0xf]
        %v386 = vld [vmem:[%s239 + $0x19c] sm:$0xf]
        %v387 = vld [vmem:[%s239 + $0x1a0] sm:$0xf]
        %v388 = vld [vmem:[%s239 + $0x1a4] sm:$0xf]
        %v389 = vld [vmem:[%s239 + $0x1a8] sm:$0xf]
        %v390 = vld [vmem:[%s239 + $0x1ac] sm:$0xf]
        %v391 = vld [vmem:[%s239 + $0x1b0] sm:$0xf]
        %v392 = vld [vmem:[%s239 + $0x1b4] sm:$0xf]
        %v393 = vld [vmem:[%s239 + $0x1b8] sm:$0xf]
        %v394 = vld [vmem:[%s239 + $0x1bc] sm:$0xf]
        %v395 = vld [vmem:[%s239 + $0x1c0] sm:$0xf]
        %v396 = vld [vmem:[%s239 + $0x1c4] sm:$0xf]
        %v397 = vld [vmem:[%s239 + $0x1c8] sm:$0xf]
        %v398 = vld [vmem:[%s239 + $0x1cc] sm:$0xf]
        %v399 = vld [vmem:[%s239 + $0x1d0] sm:$0xf]
        %v400 = vld [vmem:[%s239 + $0x1d4] sm:$0xf]
        %v401 = vld [vmem:[%s239 + $0x1d8] sm:$0xf]
        %v402 = vld [vmem:[%s239 + $0x1dc] sm:$0xf]
        %v403 = vld [vmem:[%s239 + $0x1e0] sm:$0xf]
        %v404 = vld [vmem:[%s239 + $0x1e4] sm:$0xf]
        %v405 = vld [vmem:[%s239 + $0x1e8] sm:$0xf]
        %v406 = vld [vmem:[%s239 + $0x1ec] sm:$0xf]
        %v407 = vld [vmem:[%s239 + $0x1f0] sm:$0xf]
        %v408 = vld [vmem:[%s239 + $0x1f4] sm:$0xf]
        %v409 = vld [vmem:[%s239 + $0x1f8] sm:$0xf]
        %v410 = vld [vmem:[%s239 + $0x1fc] sm:$0xf]
        %v411 = vld [vmem:[#allocation5] sm:$0xf]
        %v412 = vld [vmem:[#allocation5 + $0x4] sm:$0xf]
        %v413 = vld [vmem:[#allocation5 + $0x8] sm:$0xf]
        %v414 = vld [vmem:[#allocation5 + $0xc] sm:$0xf]
        %v415 = vld [vmem:[#allocation5 + $0x10] sm:$0xf]
        %v416 = vld [vmem:[#allocation5 + $0x14] sm:$0xf]
        %v417 = vld [vmem:[#allocation5 + $0x18] sm:$0xf]
        %v418 = vld [vmem:[#allocation5 + $0x1c] sm:$0xf]
        %v419 = vld [vmem:[#allocation5 + $0x20] sm:$0xf]
        %v420 = vld [vmem:[#allocation5 + $0x24] sm:$0xf]
        %v421 = vld [vmem:[#allocation5 + $0x28] sm:$0xf]
        %v422 = vld [vmem:[#allocation5 + $0x2c] sm:$0xf]
        %v423 = vld [vmem:[#allocation5 + $0x30] sm:$0xf]
        %v424 = vld [vmem:[#allocation5 + $0x34] sm:$0xf]
        %v425 = vld [vmem:[#allocation5 + $0x38] sm:$0xf]
        %v426 = vld [vmem:[#allocation5 + $0x3c] sm:$0xf]
        %v555 = vunpack.c.l.b16 %v283
        %v556 = vunpack.c.l.b16 %v284
        %v557 = vunpack.c.l.b16 %v285
        %v558 = vunpack.c.l.b16 %v286
        %v559 = vunpack.c.l.b16 %v287
        %v560 = vunpack.c.l.b16 %v288
        %v561 = vunpack.c.l.b16 %v289
        %v562 = vunpack.c.l.b16 %v290
        %v563 = vunpack.c.l.b16 %v291
        %v564 = vunpack.c.l.b16 %v292
        %v565 = vunpack.c.l.b16 %v293
        %v566 = vunpack.c.l.b16 %v294
        %v567 = vunpack.c.l.b16 %v295
        %v568 = vunpack.c.l.b16 %v296
        %v569 = vunpack.c.l.b16 %v297
        %v570 = vunpack.c.l.b16 %v298
        %v571 = vunpack.c.l.b16 %v299
        %v572 = vunpack.c.l.b16 %v300
        %v573 = vunpack.c.l.b16 %v301
        %v574 = vunpack.c.l.b16 %v302
        %v575 = vunpack.c.l.b16 %v303
        %v576 = vunpack.c.l.b16 %v304
        %v577 = vunpack.c.l.b16 %v305
        %v578 = vunpack.c.l.b16 %v306
        %v579 = vunpack.c.l.b16 %v307
        %v580 = vunpack.c.l.b16 %v308
        %v581 = vunpack.c.l.b16 %v309
        %v582 = vunpack.c.l.b16 %v310
        %v583 = vunpack.c.l.b16 %v311
        %v584 = vunpack.c.l.b16 %v312
        %v585 = vunpack.c.l.b16 %v313
        %v586 = vunpack.c.l.b16 %v314
        %v587 = vunpack.c.l.b16 %v315
        %v588 = vunpack.c.l.b16 %v316
        %v589 = vunpack.c.l.b16 %v317
        %v590 = vunpack.c.l.b16 %v318
        %v591 = vunpack.c.l.b16 %v319
        %v592 = vunpack.c.l.b16 %v320
        %v593 = vunpack.c.l.b16 %v321
        %v594 = vunpack.c.l.b16 %v322
        %v595 = vunpack.c.l.b16 %v323
        %v596 = vunpack.c.l.b16 %v324
        %v597 = vunpack.c.l.b16 %v325
        %v598 = vunpack.c.l.b16 %v326
        %v599 = vunpack.c.l.b16 %v327
        %v600 = vunpack.c.l.b16 %v328
        %v601 = vunpack.c.l.b16 %v329
        %v602 = vunpack.c.l.b16 %v330
        %v603 = vunpack.c.l.b16 %v331
        %v604 = vunpack.c.l.b16 %v332
        %v605 = vunpack.c.l.b16 %v333
        %v606 = vunpack.c.l.b16 %v334
        %v607 = vunpack.c.l.b16 %v335
        %v608 = vunpack.c.l.b16 %v336
        %v609 = vunpack.c.l.b16 %v337
        %v610 = vunpack.c.l.b16 %v338
        %v611 = vunpack.c.l.b16 %v339
        %v612 = vunpack.c.l.b16 %v340
        %v613 = vunpack.c.l.b16 %v341
        %v614 = vunpack.c.l.b16 %v342
        %v615 = vunpack.c.l.b16 %v343
        %v616 = vunpack.c.l.b16 %v344
        %v617 = vunpack.c.l.b16 %v345
        %v618 = vunpack.c.l.b16 %v346
        %v619 = vunpack.c.l.b16 %v347
        %v620 = vunpack.c.l.b16 %v348
        %v621 = vunpack.c.l.b16 %v349
        %v622 = vunpack.c.l.b16 %v350
        %v623 = vunpack.c.l.b16 %v351
        %v624 = vunpack.c.l.b16 %v352
        %v625 = vunpack.c.l.b16 %v353
        %v626 = vunpack.c.l.b16 %v354
        %v627 = vunpack.c.l.b16 %v355
        %v628 = vunpack.c.l.b16 %v356
        %v629 = vunpack.c.l.b16 %v357
        %v630 = vunpack.c.l.b16 %v358
        %v631 = vunpack.c.l.b16 %v359
        %v632 = vunpack.c.l.b16 %v360
        %v633 = vunpack.c.l.b16 %v361
        %v634 = vunpack.c.l.b16 %v362
        %v635 = vunpack.c.l.b16 %v363
        %v636 = vunpack.c.l.b16 %v364
        %v637 = vunpack.c.l.b16 %v365
        %v638 = vunpack.c.l.b16 %v366
        %v639 = vunpack.c.l.b16 %v367
        %v640 = vunpack.c.l.b16 %v368
        %v641 = vunpack.c.l.b16 %v369
        %v642 = vunpack.c.l.b16 %v370
        %v643 = vunpack.c.l.b16 %v371
        %v644 = vunpack.c.l.b16 %v372
        %v645 = vunpack.c.l.b16 %v373
        %v646 = vunpack.c.l.b16 %v374
        %v647 = vunpack.c.l.b16 %v375
        %v648 = vunpack.c.l.b16 %v376
        %v649 = vunpack.c.l.b16 %v377
        %v650 = vunpack.c.l.b16 %v378
        %v651 = vunpack.c.l.b16 %v379
        %v652 = vunpack.c.l.b16 %v380
        %v653 = vunpack.c.l.b16 %v381
        %v654 = vunpack.c.l.b16 %v382
        %v655 = vunpack.c.l.b16 %v383
        %v656 = vunpack.c.l.b16 %v384
        %v657 = vunpack.c.l.b16 %v385
        %v658 = vunpack.c.l.b16 %v386
        %v659 = vunpack.c.l.b16 %v387
        %v660 = vunpack.c.l.b16 %v388
        %v661 = vunpack.c.l.b16 %v389
        %v662 = vunpack.c.l.b16 %v390
        %v663 = vunpack.c.l.b16 %v391
        %v664 = vunpack.c.l.b16 %v392
        %v665 = vunpack.c.l.b16 %v393
        %v666 = vunpack.c.l.b16 %v394
        %v667 = vunpack.c.l.b16 %v395
        %v668 = vunpack.c.l.b16 %v396
        %v669 = vunpack.c.l.b16 %v397
        %v670 = vunpack.c.l.b16 %v398
        %v671 = vunpack.c.l.b16 %v399
        %v672 = vunpack.c.l.b16 %v400
        %v673 = vunpack.c.l.b16 %v401
        %v674 = vunpack.c.l.b16 %v402
        %v675 = vunpack.c.l.b16 %v403
        %v676 = vunpack.c.l.b16 %v404
        %v677 = vunpack.c.l.b16 %v405
        %v678 = vunpack.c.l.b16 %v406
        %v679 = vunpack.c.l.b16 %v407
        %v680 = vunpack.c.l.b16 %v408
        %v681 = vunpack.c.l.b16 %v409
        %v682 = vunpack.c.l.b16 %v410
        %v683 = vpack.c.b16 %v556, %v555
        %v684 = vpack.c.b16 %v558, %v557
        %v685 = vpack.c.b16 %v560, %v559
        %v686 = vpack.c.b16 %v562, %v561
        %v687 = vpack.c.b16 %v564, %v563
        %v688 = vpack.c.b16 %v566, %v565
        %v689 = vpack.c.b16 %v568, %v567
        %v690 = vpack.c.b16 %v570, %v569
        %v691 = vpack.c.b16 %v572, %v571
        %v692 = vpack.c.b16 %v574, %v573
        %v693 = vpack.c.b16 %v576, %v575
        %v694 = vpack.c.b16 %v578, %v577
        %v695 = vpack.c.b16 %v580, %v579
        %v696 = vpack.c.b16 %v582, %v581
        %v697 = vpack.c.b16 %v584, %v583
        %v698 = vpack.c.b16 %v586, %v585
        %v699 = vpack.c.b16 %v588, %v587
        %v700 = vpack.c.b16 %v590, %v589
        %v701 = vpack.c.b16 %v592, %v591
        %v702 = vpack.c.b16 %v594, %v593
        %v703 = vpack.c.b16 %v596, %v595
        %v704 = vpack.c.b16 %v598, %v597
        %v705 = vpack.c.b16 %v600, %v599
        %v706 = vpack.c.b16 %v602, %v601
        %v707 = vpack.c.b16 %v604, %v603
        %v708 = vpack.c.b16 %v606, %v605
        %v709 = vpack.c.b16 %v608, %v607
        %v710 = vpack.c.b16 %v610, %v609
        %v711 = vpack.c.b16 %v612, %v611
        %v712 = vpack.c.b16 %v614, %v613
        %v713 = vpack.c.b16 %v616, %v615
        %v714 = vpack.c.b16 %v618, %v617
        %v715 = vpack.c.b16 %v620, %v619
        %v716 = vpack.c.b16 %v622, %v621
        %v717 = vpack.c.b16 %v624, %v623
        %v718 = vpack.c.b16 %v626, %v625
        %v719 = vpack.c.b16 %v628, %v627
        %v720 = vpack.c.b16 %v630, %v629
        %v721 = vpack.c.b16 %v632, %v631
        %v722 = vpack.c.b16 %v634, %v633
        %v723 = vpack.c.b16 %v636, %v635
        %v724 = vpack.c.b16 %v638, %v637
        %v725 = vpack.c.b16 %v640, %v639
        %v726 = vpack.c.b16 %v642, %v641
        %v727 = vpack.c.b16 %v644, %v643
        %v728 = vpack.c.b16 %v646, %v645
        %v729 = vpack.c.b16 %v648, %v647
        %v730 = vpack.c.b16 %v650, %v649
        %v731 = vpack.c.b16 %v652, %v651
        %v732 = vpack.c.b16 %v654, %v653
        %v733 = vpack.c.b16 %v656, %v655
        %v734 = vpack.c.b16 %v658, %v657
        %v735 = vpack.c.b16 %v660, %v659
        %v736 = vpack.c.b16 %v662, %v661
        %v737 = vpack.c.b16 %v664, %v663
        %v738 = vpack.c.b16 %v666, %v665
        %v739 = vpack.c.b16 %v668, %v667
        %v740 = vpack.c.b16 %v670, %v669
        %v741 = vpack.c.b16 %v672, %v671
        %v742 = vpack.c.b16 %v674, %v673
        %v743 = vpack.c.b16 %v676, %v675
        %v744 = vpack.c.b16 %v678, %v677
        %v745 = vpack.c.b16 %v680, %v679
        %v746 = vpack.c.b16 %v682, %v681
        %v827 = vunpack.c.l.b16 %v411
        %v828 = vunpack.c.l.b16 %v412
        %v829 = vunpack.c.l.b16 %v413
        %v830 = vunpack.c.l.b16 %v414
        %v831 = vunpack.c.l.b16 %v415
        %v832 = vunpack.c.l.b16 %v416
        %v833 = vunpack.c.l.b16 %v417
        %v834 = vunpack.c.l.b16 %v418
        %v835 = vunpack.c.l.b16 %v419
        %v836 = vunpack.c.l.b16 %v420
        %v837 = vunpack.c.l.b16 %v421
        %v838 = vunpack.c.l.b16 %v422
        %v839 = vunpack.c.l.b16 %v423
        %v840 = vunpack.c.l.b16 %v424
        %v841 = vunpack.c.l.b16 %v425
        %v842 = vunpack.c.l.b16 %v426
        %v843 = vpack.c.b16 %v828, %v827
        %v844 = vpack.c.b16 %v830, %v829
        %v845 = vpack.c.b16 %v832, %v831
        %v846 = vpack.c.b16 %v834, %v833
        %v847 = vpack.c.b16 %v836, %v835
        %v848 = vpack.c.b16 %v838, %v837
        %v849 = vpack.c.b16 %v840, %v839
        %v850 = vpack.c.b16 %v842, %v841
        %859 = vmatprep.subr.bf16.mxu0 0
        %860 = vmatpush1.bf16.msra.mxu0 %v843
        %861 = vmatprep.subr.bf16.mxu0 0
        %862 = vmatpush1.bf16.msra.mxu0 %v844
        %863 = vmatprep.subr.bf16.mxu0 0
        %864 = vmatpush1.bf16.msra.mxu0 %v845
        %865 = vmatprep.subr.bf16.mxu0 0
        %866 = vmatpush1.bf16.msra.mxu0 %v846
        %867 = vmatprep.subr.bf16.mxu0 0
        %868 = vmatpush1.bf16.msra.mxu0 %v847
        %869 = vmatprep.subr.bf16.mxu0 0
        %870 = vmatpush1.bf16.msra.mxu0 %v848
        %871 = vmatprep.subr.bf16.mxu0 0
        %872 = vmatpush1.bf16.msra.mxu0 %v849
        %873 = vmatprep.subr.bf16.mxu0 0
        %874 = vmatpush1.bf16.msra.mxu0 %v850
        %875 = vmatprep.subr.bf16.mxu0 0
        %876 = vmatpush1.bf16.msra.mxu0 0
        %877 = vmatprep.subr.bf16.mxu0 0
        %878 = vmatpush1.bf16.msra.mxu0 0
        %879 = vmatprep.subr.bf16.mxu0 0
        %880 = vmatpush1.bf16.msra.mxu0 0
        %881 = vmatprep.subr.bf16.mxu0 0
        %882 = vmatpush1.bf16.msra.mxu0 0
        %883 = vmatprep.subr.bf16.mxu0 0
        %884 = vmatpush1.bf16.msra.mxu0 0
        %885 = vmatprep.subr.bf16.mxu0 0
        %886 = vmatpush1.bf16.msra.mxu0 0
        %887 = vmatprep.subr.bf16.mxu0 0
        %888 = vmatpush1.bf16.msra.mxu0 0
        %889 = vmatprep.subr.bf16.mxu0 0
        %890 = vmatpush1.bf16.msra.mxu0 0
        %891 = vmatprep.mubr.bf16.mxu0 0
        %892 = vmatmul.mubr.bf16.gmra.mrb[0].mxu0 %v683
        %v893 = vpop.f32.mrb[0].mxu0
        %v894 = vadd.f32 0.0, %v893
        %v895 = vpop.f32.mrb[0].mxu0
        %v896 = vpop.f32.mrb[0].mxu0
        %v897 = vadd.f32 0.0, %v896
        %v898 = vpop.f32.mrb[0].mxu0
        %899 = vmatprep.mubr.bf16.mxu0 0
        %900 = vmatmul.mubr.bf16.gmra.mrb[0].mxu0 %v684
        %v901 = vpop.f32.mrb[0].mxu0
        %v902 = vadd.f32 0.0, %v901
        %v903 = vpop.f32.mrb[0].mxu0
        %v904 = vpop.f32.mrb[0].mxu0
        %v905 = vadd.f32 0.0, %v904
        %v906 = vpop.f32.mrb[0].mxu0
        %907 = vmatprep.mubr.bf16.mxu0 0
        %908 = vmatmul.mubr.bf16.gmra.mrb[0].mxu0 %v685
        %v909 = vpop.f32.mrb[0].mxu0
        %v910 = vadd.f32 0.0, %v909
        %v911 = vpop.f32.mrb[0].mxu0
        %v912 = vpop.f32.mrb[0].mxu0
        %v913 = vadd.f32 0.0, %v912
        %v914 = vpop.f32.mrb[0].mxu0
        %915 = vmatprep.mubr.bf16.mxu0 0
        %916 = vmatmul.mubr.bf16.gmra.mrb[0].mxu0 %v686
        %v917 = vpop.f32.mrb[0].mxu0
        %v918 = vadd.f32 0.0, %v917
        %v919 = vpop.f32.mrb[0].mxu0
        %v920 = vpop.f32.mrb[0].mxu0
        %v921 = vadd.f32 0.0, %v920
        %v922 = vpop.f32.mrb[0].mxu0
        %923 = vmatprep.mubr.bf16.mxu0 0
        %924 = vmatmul.mubr.bf16.gmra.mrb[0].mxu0 %v687
        %v925 = vpop.f32.mrb[0].mxu0
        %v926 = vadd.f32 0.0, %v925
        %v927 = vpop.f32.mrb[0].mxu0
        %v928 = vpop.f32.mrb[0].mxu0
        %v929 = vadd.f32 0.0, %v928
        %v930 = vpop.f32.mrb[0].mxu0
        %931 = vmatprep.mubr.bf16.mxu0 0
        %932 = vmatmul.mubr.bf16.gmra.mrb[0].mxu0 %v688
        %v933 = vpop.f32.mrb[0].mxu0
        %v934 = vadd.f32 0.0, %v933
        %v935 = vpop.f32.mrb[0].mxu0
        %v936 = vpop.f32.mrb[0].mxu0
        %v937 = vadd.f32 0.0, %v936
        %v938 = vpop.f32.mrb[0].mxu0
        %939 = vmatprep.mubr.bf16.mxu0 0
        %940 = vmatmul.mubr.bf16.gmra.mrb[0].mxu0 %v689
        %v941 = vpop.f32.mrb[0].mxu0
        %v942 = vadd.f32 0.0, %v941
        %v943 = vpop.f32.mrb[0].mxu0
        %v944 = vpop.f32.mrb[0].mxu0
        %v945 = vadd.f32 0.0, %v944
        %v946 = vpop.f32.mrb[0].mxu0
        %947 = vmatprep.mubr.bf16.mxu0 0
        %948 = vmatmul.mubr.bf16.gmra.mrb[0].mxu0 %v690
        %v949 = vpop.f32.mrb[0].mxu0
        %v950 = vadd.f32 0.0, %v949
        %v951 = vpop.f32.mrb[0].mxu0
        %v952 = vpop.f32.mrb[0].mxu0
        %v953 = vadd.f32 0.0, %v952
        %v954 = vpop.f32.mrb[0].mxu0
        %955 = vmatprep.mubr.bf16.mxu0 0
        %956 = vmatmul.mubr.bf16.gmra.mrb[0].mxu0 %v691
        %v957 = vpop.f32.mrb[0].mxu0
        %v958 = vadd.f32 0.0, %v957
        %v959 = vpop.f32.mrb[0].mxu0
        %v960 = vpop.f32.mrb[0].mxu0
        %v961 = vadd.f32 0.0, %v960
        %v962 = vpop.f32.mrb[0].mxu0
        %963 = vmatprep.mubr.bf16.mxu0 0
        %964 = vmatmul.mubr.bf16.gmra.mrb[0].mxu0 %v692
        %v965 = vpop.f32.mrb[0].mxu0
        %v966 = vadd.f32 0.0, %v965
        %v967 = vpop.f32.mrb[0].mxu0
        %v968 = vpop.f32.mrb[0].mxu0
        %v969 = vadd.f32 0.0, %v968
        %v970 = vpop.f32.mrb[0].mxu0
        %971 = vmatprep.mubr.bf16.mxu0 0
        %972 = vmatmul.mubr.bf16.gmra.mrb[0].mxu0 %v693
        %v973 = vpop.f32.mrb[0].mxu0
        %v974 = vadd.f32 0.0, %v973
        %v975 = vpop.f32.mrb[0].mxu0
        %v976 = vpop.f32.mrb[0].mxu0
        %v977 = vadd.f32 0.0, %v976
        %v978 = vpop.f32.mrb[0].mxu0
        %979 = vmatprep.mubr.bf16.mxu0 0
        %980 = vmatmul.mubr.bf16.gmra.mrb[0].mxu0 %v694
        %v981 = vpop.f32.mrb[0].mxu0
        %v982 = vadd.f32 0.0, %v981
        %v983 = vpop.f32.mrb[0].mxu0
        %v984 = vpop.f32.mrb[0].mxu0
        %v985 = vadd.f32 0.0, %v984
        %v986 = vpop.f32.mrb[0].mxu0
        %987 = vmatprep.mubr.bf16.mxu0 0
        %988 = vmatmul.mubr.bf16.gmra.mrb[0].mxu0 %v695
        %v989 = vpop.f32.mrb[0].mxu0
        %v990 = vadd.f32 0.0, %v989
        %v991 = vpop.f32.mrb[0].mxu0
        %v992 = vpop.f32.mrb[0].mxu0
        %v993 = vadd.f32 0.0, %v992
        %v994 = vpop.f32.mrb[0].mxu0
        %995 = vmatprep.mubr.bf16.mxu0 0
        %996 = vmatmul.mubr.bf16.gmra.mrb[0].mxu0 %v696
        %v997 = vpop.f32.mrb[0].mxu0
        %v998 = vadd.f32 0.0, %v997
        %v999 = vpop.f32.mrb[0].mxu0
        %v1000 = vpop.f32.mrb[0].mxu0
        %v1001 = vadd.f32 0.0, %v1000
        %v1002 = vpop.f32.mrb[0].mxu0
        %1003 = vmatprep.mubr.bf16.mxu0 0
        %1004 = vmatmul.mubr.bf16.gmra.mrb[0].mxu0 %v697
        %v1005 = vpop.f32.mrb[0].mxu0
        %v1006 = vadd.f32 0.0, %v1005
        %v1007 = vpop.f32.mrb[0].mxu0
        %v1008 = vpop.f32.mrb[0].mxu0
        %v1009 = vadd.f32 0.0, %v1008
        %v1010 = vpop.f32.mrb[0].mxu0
        %1011 = vmatprep.mubr.bf16.mxu0 0
        %1012 = vmatmul.mubr.bf16.gmra.mrb[0].mxu0 %v698
        %v1013 = vpop.f32.mrb[0].mxu0
        %v1014 = vadd.f32 0.0, %v1013
        %v1015 = vpop.f32.mrb[0].mxu0
        %v1016 = vpop.f32.mrb[0].mxu0
        %v1017 = vadd.f32 0.0, %v1016
        %v1018 = vpop.f32.mrb[0].mxu0
        %1019 = vmatprep.mubr.bf16.mxu0 0
        %1020 = vmatmul.mubr.bf16.gmra.mrb[0].mxu0 %v699
        %v1021 = vpop.f32.mrb[0].mxu0
        %v1022 = vadd.f32 0.0, %v1021
        %v1023 = vpop.f32.mrb[0].mxu0
        %v1024 = vpop.f32.mrb[0].mxu0
        %v1025 = vadd.f32 0.0, %v1024
        %v1026 = vpop.f32.mrb[0].mxu0
        %1027 = vmatprep.mubr.bf16.mxu0 0
        %1028 = vmatmul.mubr.bf16.gmra.mrb[0].mxu0 %v700
        %v1029 = vpop.f32.mrb[0].mxu0
        %v1030 = vadd.f32 0.0, %v1029
        %v1031 = vpop.f32.mrb[0].mxu0
        %v1032 = vpop.f32.mrb[0].mxu0
        %v1033 = vadd.f32 0.0, %v1032
        %v1034 = vpop.f32.mrb[0].mxu0
        %1035 = vmatprep.mubr.bf16.mxu0 0
        %1036 = vmatmul.mubr.bf16.gmra.mrb[0].mxu0 %v701
        %v1037 = vpop.f32.mrb[0].mxu0
        %v1038 = vadd.f32 0.0, %v1037
        %v1039 = vpop.f32.mrb[0].mxu0
        %v1040 = vpop.f32.mrb[0].mxu0
        %v1041 = vadd.f32 0.0, %v1040
        %v1042 = vpop.f32.mrb[0].mxu0
        %1043 = vmatprep.mubr.bf16.mxu0 0
        %1044 = vmatmul.mubr.bf16.gmra.mrb[0].mxu0 %v702
        %v1045 = vpop.f32.mrb[0].mxu0
        %v1046 = vadd.f32 0.0, %v1045
        %v1047 = vpop.f32.mrb[0].mxu0
        %v1048 = vpop.f32.mrb[0].mxu0
        %v1049 = vadd.f32 0.0, %v1048
        %v1050 = vpop.f32.mrb[0].mxu0
        %1051 = vmatprep.mubr.bf16.mxu0 0
        %1052 = vmatmul.mubr.bf16.gmra.mrb[0].mxu0 %v703
        %v1053 = vpop.f32.mrb[0].mxu0
        %v1054 = vadd.f32 0.0, %v1053
        %v1055 = vpop.f32.mrb[0].mxu0
        %v1056 = vpop.f32.mrb[0].mxu0
        %v1057 = vadd.f32 0.0, %v1056
        %v1058 = vpop.f32.mrb[0].mxu0
        %1059 = vmatprep.mubr.bf16.mxu0 0
        %1060 = vmatmul.mubr.bf16.gmra.mrb[0].mxu0 %v704
        %v1061 = vpop.f32.mrb[0].mxu0
        %v1062 = vadd.f32 0.0, %v1061
        %v1063 = vpop.f32.mrb[0].mxu0
        %v1064 = vpop.f32.mrb[0].mxu0
        %v1065 = vadd.f32 0.0, %v1064
        %v1066 = vpop.f32.mrb[0].mxu0
        %1067 = vmatprep.mubr.bf16.mxu0 0
        %1068 = vmatmul.mubr.bf16.gmra.mrb[0].mxu0 %v705
        %v1069 = vpop.f32.mrb[0].mxu0
        %v1070 = vadd.f32 0.0, %v1069
        %v1071 = vpop.f32.mrb[0].mxu0
        %v1072 = vpop.f32.mrb[0].mxu0
        %v1073 = vadd.f32 0.0, %v1072
        %v1074 = vpop.f32.mrb[0].mxu0
        %1075 = vmatprep.mubr.bf16.mxu0 0
        %1076 = vmatmul.mubr.bf16.gmra.mrb[0].mxu0 %v706
        %v1077 = vpop.f32.mrb[0].mxu0
        %v1078 = vadd.f32 0.0, %v1077
        %v1079 = vpop.f32.mrb[0].mxu0
        %v1080 = vpop.f32.mrb[0].mxu0
        %v1081 = vadd.f32 0.0, %v1080
        %v1082 = vpop.f32.mrb[0].mxu0
        %1083 = vmatprep.mubr.bf16.mxu0 0
        %1084 = vmatmul.mubr.bf16.gmra.mrb[0].mxu0 %v707
        %v1085 = vpop.f32.mrb[0].mxu0
        %v1086 = vadd.f32 0.0, %v1085
        %v1087 = vpop.f32.mrb[0].mxu0
        %v1088 = vpop.f32.mrb[0].mxu0
        %v1089 = vadd.f32 0.0, %v1088
        %v1090 = vpop.f32.mrb[0].mxu0
        %1091 = vmatprep.mubr.bf16.mxu0 0
        %1092 = vmatmul.mubr.bf16.gmra.mrb[0].mxu0 %v708
        %v1093 = vpop.f32.mrb[0].mxu0
        %v1094 = vadd.f32 0.0, %v1093
        %v1095 = vpop.f32.mrb[0].mxu0
        %v1096 = vpop.f32.mrb[0].mxu0
        %v1097 = vadd.f32 0.0, %v1096
        %v1098 = vpop.f32.mrb[0].mxu0
        %1099 = vmatprep.mubr.bf16.mxu0 0
        %1100 = vmatmul.mubr.bf16.gmra.mrb[0].mxu0 %v709
        %v1101 = vpop.f32.mrb[0].mxu0
        %v1102 = vadd.f32 0.0, %v1101
        %v1103 = vpop.f32.mrb[0].mxu0
        %v1104 = vpop.f32.mrb[0].mxu0
        %v1105 = vadd.f32 0.0, %v1104
        %v1106 = vpop.f32.mrb[0].mxu0
        %1107 = vmatprep.mubr.bf16.mxu0 0
        %1108 = vmatmul.mubr.bf16.gmra.mrb[0].mxu0 %v710
        %v1109 = vpop.f32.mrb[0].mxu0
        %v1110 = vadd.f32 0.0, %v1109
        %v1111 = vpop.f32.mrb[0].mxu0
        %v1112 = vpop.f32.mrb[0].mxu0
        %v1113 = vadd.f32 0.0, %v1112
        %v1114 = vpop.f32.mrb[0].mxu0
        %1115 = vmatprep.mubr.bf16.mxu0 0
        %1116 = vmatmul.mubr.bf16.gmra.mrb[0].mxu0 %v711
        %v1117 = vpop.f32.mrb[0].mxu0
        %v1118 = vadd.f32 0.0, %v1117
        %v1119 = vpop.f32.mrb[0].mxu0
        %v1120 = vpop.f32.mrb[0].mxu0
        %v1121 = vadd.f32 0.0, %v1120
        %v1122 = vpop.f32.mrb[0].mxu0
        %1123 = vmatprep.mubr.bf16.mxu0 0
        %1124 = vmatmul.mubr.bf16.gmra.mrb[0].mxu0 %v712
        %v1125 = vpop.f32.mrb[0].mxu0
        %v1126 = vadd.f32 0.0, %v1125
        %v1127 = vpop.f32.mrb[0].mxu0
        %v1128 = vpop.f32.mrb[0].mxu0
        %v1129 = vadd.f32 0.0, %v1128
        %v1130 = vpop.f32.mrb[0].mxu0
        %1131 = vmatprep.mubr.bf16.mxu0 0
        %1132 = vmatmul.mubr.bf16.gmra.mrb[0].mxu0 %v713
        %v1133 = vpop.f32.mrb[0].mxu0
        %v1134 = vadd.f32 0.0, %v1133
        %v1135 = vpop.f32.mrb[0].mxu0
        %v1136 = vpop.f32.mrb[0].mxu0
        %v1137 = vadd.f32 0.0, %v1136
        %v1138 = vpop.f32.mrb[0].mxu0
        %1139 = vmatprep.mubr.bf16.mxu0 0
        %1140 = vmatmul.mubr.bf16.gmra.mrb[0].mxu0 %v714
        %v1141 = vpop.f32.mrb[0].mxu0
        %v1142 = vadd.f32 0.0, %v1141
        %v1143 = vpop.f32.mrb[0].mxu0
        %v1144 = vpop.f32.mrb[0].mxu0
        %v1145 = vadd.f32 0.0, %v1144
        %v1146 = vpop.f32.mrb[0].mxu0
        %1147 = vmatprep.mubr.bf16.mxu0 0
        %1148 = vmatmul.mubr.bf16.gmra.mrb[0].mxu0 %v715
        %v1149 = vpop.f32.mrb[0].mxu0
        %v1150 = vadd.f32 0.0, %v1149
        %v1151 = vpop.f32.mrb[0].mxu0
        %v1152 = vpop.f32.mrb[0].mxu0
        %v1153 = vadd.f32 0.0, %v1152
        %v1154 = vpop.f32.mrb[0].mxu0
        %1155 = vmatprep.mubr.bf16.mxu0 0
        %1156 = vmatmul.mubr.bf16.gmra.mrb[0].mxu0 %v716
        %v1157 = vpop.f32.mrb[0].mxu0
        %v1158 = vadd.f32 0.0, %v1157
        %v1159 = vpop.f32.mrb[0].mxu0
        %v1160 = vpop.f32.mrb[0].mxu0
        %v1161 = vadd.f32 0.0, %v1160
        %v1162 = vpop.f32.mrb[0].mxu0
        %1163 = vmatprep.mubr.bf16.mxu0 0
        %1164 = vmatmul.mubr.bf16.gmra.mrb[0].mxu0 %v717
        %v1165 = vpop.f32.mrb[0].mxu0
        %v1166 = vadd.f32 0.0, %v1165
        %v1167 = vpop.f32.mrb[0].mxu0
        %v1168 = vpop.f32.mrb[0].mxu0
        %v1169 = vadd.f32 0.0, %v1168
        %v1170 = vpop.f32.mrb[0].mxu0
        %1171 = vmatprep.mubr.bf16.mxu0 0
        %1172 = vmatmul.mubr.bf16.gmra.mrb[0].mxu0 %v718
        %v1173 = vpop.f32.mrb[0].mxu0
        %v1174 = vadd.f32 0.0, %v1173
        %v1175 = vpop.f32.mrb[0].mxu0
        %v1176 = vpop.f32.mrb[0].mxu0
        %v1177 = vadd.f32 0.0, %v1176
        %v1178 = vpop.f32.mrb[0].mxu0
        %1179 = vmatprep.mubr.bf16.mxu0 0
        %1180 = vmatmul.mubr.bf16.gmra.mrb[0].mxu0 %v719
        %v1181 = vpop.f32.mrb[0].mxu0
        %v1182 = vadd.f32 0.0, %v1181
        %v1183 = vpop.f32.mrb[0].mxu0
        %v1184 = vpop.f32.mrb[0].mxu0
        %v1185 = vadd.f32 0.0, %v1184
        %v1186 = vpop.f32.mrb[0].mxu0
        %1187 = vmatprep.mubr.bf16.mxu0 0
        %1188 = vmatmul.mubr.bf16.gmra.mrb[0].mxu0 %v720
        %v1189 = vpop.f32.mrb[0].mxu0
        %v1190 = vadd.f32 0.0, %v1189
        %v1191 = vpop.f32.mrb[0].mxu0
        %v1192 = vpop.f32.mrb[0].mxu0
        %v1193 = vadd.f32 0.0, %v1192
        %v1194 = vpop.f32.mrb[0].mxu0
        %1195 = vmatprep.mubr.bf16.mxu0 0
        %1196 = vmatmul.mubr.bf16.gmra.mrb[0].mxu0 %v721
        %v1197 = vpop.f32.mrb[0].mxu0
        %v1198 = vadd.f32 0.0, %v1197
        %v1199 = vpop.f32.mrb[0].mxu0
        %v1200 = vpop.f32.mrb[0].mxu0
        %v1201 = vadd.f32 0.0, %v1200
        %v1202 = vpop.f32.mrb[0].mxu0
        %1203 = vmatprep.mubr.bf16.mxu0 0
        %1204 = vmatmul.mubr.bf16.gmra.mrb[0].mxu0 %v722
        %v1205 = vpop.f32.mrb[0].mxu0
        %v1206 = vadd.f32 0.0, %v1205
        %v1207 = vpop.f32.mrb[0].mxu0
        %v1208 = vpop.f32.mrb[0].mxu0
        %v1209 = vadd.f32 0.0, %v1208
        %v1210 = vpop.f32.mrb[0].mxu0
        %1211 = vmatprep.mubr.bf16.mxu0 0
        %1212 = vmatmul.mubr.bf16.gmra.mrb[0].mxu0 %v723
        %v1213 = vpop.f32.mrb[0].mxu0
        %v1214 = vadd.f32 0.0, %v1213
        %v1215 = vpop.f32.mrb[0].mxu0
        %v1216 = vpop.f32.mrb[0].mxu0
        %v1217 = vadd.f32 0.0, %v1216
        %v1218 = vpop.f32.mrb[0].mxu0
        %1219 = vmatprep.mubr.bf16.mxu0 0
        %1220 = vmatmul.mubr.bf16.gmra.mrb[0].mxu0 %v724
        %v1221 = vpop.f32.mrb[0].mxu0
        %v1222 = vadd.f32 0.0, %v1221
        %v1223 = vpop.f32.mrb[0].mxu0
        %v1224 = vpop.f32.mrb[0].mxu0
        %v1225 = vadd.f32 0.0, %v1224
        %v1226 = vpop.f32.mrb[0].mxu0
        %1227 = vmatprep.mubr.bf16.mxu0 0
        %1228 = vmatmul.mubr.bf16.gmra.mrb[0].mxu0 %v725
        %v1229 = vpop.f32.mrb[0].mxu0
        %v1230 = vadd.f32 0.0, %v1229
        %v1231 = vpop.f32.mrb[0].mxu0
        %v1232 = vpop.f32.mrb[0].mxu0
        %v1233 = vadd.f32 0.0, %v1232
        %v1234 = vpop.f32.mrb[0].mxu0
        %1235 = vmatprep.mubr.bf16.mxu0 0
        %1236 = vmatmul.mubr.bf16.gmra.mrb[0].mxu0 %v726
        %v1237 = vpop.f32.mrb[0].mxu0
        %v1238 = vadd.f32 0.0, %v1237
        %v1239 = vpop.f32.mrb[0].mxu0
        %v1240 = vpop.f32.mrb[0].mxu0
        %v1241 = vadd.f32 0.0, %v1240
        %v1242 = vpop.f32.mrb[0].mxu0
        %1243 = vmatprep.mubr.bf16.mxu0 0
        %1244 = vmatmul.mubr.bf16.gmra.mrb[0].mxu0 %v727
        %v1245 = vpop.f32.mrb[0].mxu0
        %v1246 = vadd.f32 0.0, %v1245
        %v1247 = vpop.f32.mrb[0].mxu0
        %v1248 = vpop.f32.mrb[0].mxu0
        %v1249 = vadd.f32 0.0, %v1248
        %v1250 = vpop.f32.mrb[0].mxu0
        %1251 = vmatprep.mubr.bf16.mxu0 0
        %1252 = vmatmul.mubr.bf16.gmra.mrb[0].mxu0 %v728
        %v1253 = vpop.f32.mrb[0].mxu0
        %v1254 = vadd.f32 0.0, %v1253
        %v1255 = vpop.f32.mrb[0].mxu0
        %v1256 = vpop.f32.mrb[0].mxu0
        %v1257 = vadd.f32 0.0, %v1256
        %v1258 = vpop.f32.mrb[0].mxu0
        %1259 = vmatprep.mubr.bf16.mxu0 0
        %1260 = vmatmul.mubr.bf16.gmra.mrb[0].mxu0 %v729
        %v1261 = vpop.f32.mrb[0].mxu0
        %v1262 = vadd.f32 0.0, %v1261
        %v1263 = vpop.f32.mrb[0].mxu0
        %v1264 = vpop.f32.mrb[0].mxu0
        %v1265 = vadd.f32 0.0, %v1264
        %v1266 = vpop.f32.mrb[0].mxu0
        %1267 = vmatprep.mubr.bf16.mxu0 0
        %1268 = vmatmul.mubr.bf16.gmra.mrb[0].mxu0 %v730
        %v1269 = vpop.f32.mrb[0].mxu0
        %v1270 = vadd.f32 0.0, %v1269
        %v1271 = vpop.f32.mrb[0].mxu0
        %v1272 = vpop.f32.mrb[0].mxu0
        %v1273 = vadd.f32 0.0, %v1272
        %v1274 = vpop.f32.mrb[0].mxu0
        %1275 = vmatprep.mubr.bf16.mxu0 0
        %1276 = vmatmul.mubr.bf16.gmra.mrb[0].mxu0 %v731
        %v1277 = vpop.f32.mrb[0].mxu0
        %v1278 = vadd.f32 0.0, %v1277
        %v1279 = vpop.f32.mrb[0].mxu0
        %v1280 = vpop.f32.mrb[0].mxu0
        %v1281 = vadd.f32 0.0, %v1280
        %v1282 = vpop.f32.mrb[0].mxu0
        %1283 = vmatprep.mubr.bf16.mxu0 0
        %1284 = vmatmul.mubr.bf16.gmra.mrb[0].mxu0 %v732
        %v1285 = vpop.f32.mrb[0].mxu0
        %v1286 = vadd.f32 0.0, %v1285
        %v1287 = vpop.f32.mrb[0].mxu0
        %v1288 = vpop.f32.mrb[0].mxu0
        %v1289 = vadd.f32 0.0, %v1288
        %v1290 = vpop.f32.mrb[0].mxu0
        %1291 = vmatprep.mubr.bf16.mxu0 0
        %1292 = vmatmul.mubr.bf16.gmra.mrb[0].mxu0 %v733
        %v1293 = vpop.f32.mrb[0].mxu0
        %v1294 = vadd.f32 0.0, %v1293
        %v1295 = vpop.f32.mrb[0].mxu0
        %v1296 = vpop.f32.mrb[0].mxu0
        %v1297 = vadd.f32 0.0, %v1296
        %v1298 = vpop.f32.mrb[0].mxu0
        %1299 = vmatprep.mubr.bf16.mxu0 0
        %1300 = vmatmul.mubr.bf16.gmra.mrb[0].mxu0 %v734
        %v1301 = vpop.f32.mrb[0].mxu0
        %v1302 = vadd.f32 0.0, %v1301
        %v1303 = vpop.f32.mrb[0].mxu0
        %v1304 = vpop.f32.mrb[0].mxu0
        %v1305 = vadd.f32 0.0, %v1304
        %v1306 = vpop.f32.mrb[0].mxu0
        %1307 = vmatprep.mubr.bf16.mxu0 0
        %1308 = vmatmul.mubr.bf16.gmra.mrb[0].mxu0 %v735
        %v1309 = vpop.f32.mrb[0].mxu0
        %v1310 = vadd.f32 0.0, %v1309
        %v1311 = vpop.f32.mrb[0].mxu0
        %v1312 = vpop.f32.mrb[0].mxu0
        %v1313 = vadd.f32 0.0, %v1312
        %v1314 = vpop.f32.mrb[0].mxu0
        %1315 = vmatprep.mubr.bf16.mxu0 0
        %1316 = vmatmul.mubr.bf16.gmra.mrb[0].mxu0 %v736
        %v1317 = vpop.f32.mrb[0].mxu0
        %v1318 = vadd.f32 0.0, %v1317
        %v1319 = vpop.f32.mrb[0].mxu0
        %v1320 = vpop.f32.mrb[0].mxu0
        %v1321 = vadd.f32 0.0, %v1320
        %v1322 = vpop.f32.mrb[0].mxu0
        %1323 = vmatprep.mubr.bf16.mxu0 0
        %1324 = vmatmul.mubr.bf16.gmra.mrb[0].mxu0 %v737
        %v1325 = vpop.f32.mrb[0].mxu0
        %v1326 = vadd.f32 0.0, %v1325
        %v1327 = vpop.f32.mrb[0].mxu0
        %v1328 = vpop.f32.mrb[0].mxu0
        %v1329 = vadd.f32 0.0, %v1328
        %v1330 = vpop.f32.mrb[0].mxu0
        %1331 = vmatprep.mubr.bf16.mxu0 0
        %1332 = vmatmul.mubr.bf16.gmra.mrb[0].mxu0 %v738
        %v1333 = vpop.f32.mrb[0].mxu0
        %v1334 = vadd.f32 0.0, %v1333
        %v1335 = vpop.f32.mrb[0].mxu0
        %v1336 = vpop.f32.mrb[0].mxu0
        %v1337 = vadd.f32 0.0, %v1336
        %v1338 = vpop.f32.mrb[0].mxu0
        %1339 = vmatprep.mubr.bf16.mxu0 0
        %1340 = vmatmul.mubr.bf16.gmra.mrb[0].mxu0 %v739
        %v1341 = vpop.f32.mrb[0].mxu0
        %v1342 = vadd.f32 0.0, %v1341
        %v1343 = vpop.f32.mrb[0].mxu0
        %v1344 = vpop.f32.mrb[0].mxu0
        %v1345 = vadd.f32 0.0, %v1344
        %v1346 = vpop.f32.mrb[0].mxu0
        %1347 = vmatprep.mubr.bf16.mxu0 0
        %1348 = vmatmul.mubr.bf16.gmra.mrb[0].mxu0 %v740
        %v1349 = vpop.f32.mrb[0].mxu0
        %v1350 = vadd.f32 0.0, %v1349
        %v1351 = vpop.f32.mrb[0].mxu0
        %v1352 = vpop.f32.mrb[0].mxu0
        %v1353 = vadd.f32 0.0, %v1352
        %v1354 = vpop.f32.mrb[0].mxu0
        %1355 = vmatprep.mubr.bf16.mxu0 0
        %1356 = vmatmul.mubr.bf16.gmra.mrb[0].mxu0 %v741
        %v1357 = vpop.f32.mrb[0].mxu0
        %v1358 = vadd.f32 0.0, %v1357
        %v1359 = vpop.f32.mrb[0].mxu0
        %v1360 = vpop.f32.mrb[0].mxu0
        %v1361 = vadd.f32 0.0, %v1360
        %v1362 = vpop.f32.mrb[0].mxu0
        %1363 = vmatprep.mubr.bf16.mxu0 0
        %1364 = vmatmul.mubr.bf16.gmra.mrb[0].mxu0 %v742
        %v1365 = vpop.f32.mrb[0].mxu0
        %v1366 = vadd.f32 0.0, %v1365
        %v1367 = vpop.f32.mrb[0].mxu0
        %v1368 = vpop.f32.mrb[0].mxu0
        %v1369 = vadd.f32 0.0, %v1368
        %v1370 = vpop.f32.mrb[0].mxu0
        %1371 = vmatprep.mubr.bf16.mxu0 0
        %1372 = vmatmul.mubr.bf16.gmra.mrb[0].mxu0 %v743
        %v1373 = vpop.f32.mrb[0].mxu0
        %v1374 = vadd.f32 0.0, %v1373
        %v1375 = vpop.f32.mrb[0].mxu0
        %v1376 = vpop.f32.mrb[0].mxu0
        %v1377 = vadd.f32 0.0, %v1376
        %v1378 = vpop.f32.mrb[0].mxu0
        %1379 = vmatprep.mubr.bf16.mxu0 0
        %1380 = vmatmul.mubr.bf16.gmra.mrb[0].mxu0 %v744
        %v1381 = vpop.f32.mrb[0].mxu0
        %v1382 = vadd.f32 0.0, %v1381
        %v1383 = vpop.f32.mrb[0].mxu0
        %v1384 = vpop.f32.mrb[0].mxu0
        %v1385 = vadd.f32 0.0, %v1384
        %v1386 = vpop.f32.mrb[0].mxu0
        %1387 = vmatprep.mubr.bf16.mxu0 0
        %1388 = vmatmul.mubr.bf16.gmra.mrb[0].mxu0 %v745
        %v1389 = vpop.f32.mrb[0].mxu0
        %v1390 = vadd.f32 0.0, %v1389
        %v1391 = vpop.f32.mrb[0].mxu0
        %v1392 = vpop.f32.mrb[0].mxu0
        %v1393 = vadd.f32 0.0, %v1392
        %v1394 = vpop.f32.mrb[0].mxu0
        %1395 = vmatprep.mubr.bf16.mxu0 0
        %1396 = vmatmul.mubr.bf16.gmra.mrb[0].mxu0 %v746
        %v1397 = vpop.f32.mrb[0].mxu0
        %v1398 = vadd.f32 0.0, %v1397
        %v1399 = vpop.f32.mrb[0].mxu0
        %v1400 = vpop.f32.mrb[0].mxu0
        %v1401 = vadd.f32 0.0, %v1400
        %v1402 = vpop.f32.mrb[0].mxu0
        %1403 = vdwg.mxu0
        %v1404 = vld [vmem:[%s277] sm:$0x1]
        %v1405 = vld [vmem:[%s280] sm:$0x1]
        %v1407 = vlaneseq
        %v1408 = vshrl.u32 %v1407, 7
        %v1409 = vsub.s32 0, %v1408
        %v1410 = vrot.slane %v1404, %v1409
        %v1412 = vmul.f32 %v894, %v1410
        %v1413 = vmul.f32 %v897, %v1410
        %v1414 = vmul.f32 %v902, %v1410
        %v1415 = vmul.f32 %v905, %v1410
        %v1416 = vmul.f32 %v910, %v1410
        %v1417 = vmul.f32 %v913, %v1410
        %v1418 = vmul.f32 %v918, %v1410
        %v1419 = vmul.f32 %v921, %v1410
        %v1420 = vmul.f32 %v926, %v1410
        %v1421 = vmul.f32 %v929, %v1410
        %v1422 = vmul.f32 %v934, %v1410
        %v1423 = vmul.f32 %v937, %v1410
        %v1424 = vmul.f32 %v942, %v1410
        %v1425 = vmul.f32 %v945, %v1410
        %v1426 = vmul.f32 %v950, %v1410
        %v1427 = vmul.f32 %v953, %v1410
        %v1428 = vmul.f32 %v958, %v1410
        %v1429 = vmul.f32 %v961, %v1410
        %v1430 = vmul.f32 %v966, %v1410
        %v1431 = vmul.f32 %v969, %v1410
        %v1432 = vmul.f32 %v974, %v1410
        %v1433 = vmul.f32 %v977, %v1410
        %v1434 = vmul.f32 %v982, %v1410
        %v1435 = vmul.f32 %v985, %v1410
        %v1436 = vmul.f32 %v990, %v1410
        %v1437 = vmul.f32 %v993, %v1410
        %v1438 = vmul.f32 %v998, %v1410
        %v1439 = vmul.f32 %v1001, %v1410
        %v1440 = vmul.f32 %v1006, %v1410
        %v1441 = vmul.f32 %v1009, %v1410
        %v1442 = vmul.f32 %v1014, %v1410
        %v1443 = vmul.f32 %v1017, %v1410
        %v1444 = vmul.f32 %v1022, %v1410
        %v1445 = vmul.f32 %v1025, %v1410
        %v1446 = vmul.f32 %v1030, %v1410
        %v1447 = vmul.f32 %v1033, %v1410
        %v1448 = vmul.f32 %v1038, %v1410
        %v1449 = vmul.f32 %v1041, %v1410
        %v1450 = vmul.f32 %v1046, %v1410
        %v1451 = vmul.f32 %v1049, %v1410
        %v1452 = vmul.f32 %v1054, %v1410
        %v1453 = vmul.f32 %v1057, %v1410
        %v1454 = vmul.f32 %v1062, %v1410
        %v1455 = vmul.f32 %v1065, %v1410
        %v1456 = vmul.f32 %v1070, %v1410
        %v1457 = vmul.f32 %v1073, %v1410
        %v1458 = vmul.f32 %v1078, %v1410
        %v1459 = vmul.f32 %v1081, %v1410
        %v1460 = vmul.f32 %v1086, %v1410
        %v1461 = vmul.f32 %v1089, %v1410
        %v1462 = vmul.f32 %v1094, %v1410
        %v1463 = vmul.f32 %v1097, %v1410
        %v1464 = vmul.f32 %v1102, %v1410
        %v1465 = vmul.f32 %v1105, %v1410
        %v1466 = vmul.f32 %v1110, %v1410
        %v1467 = vmul.f32 %v1113, %v1410
        %v1468 = vmul.f32 %v1118, %v1410
        %v1469 = vmul.f32 %v1121, %v1410
        %v1470 = vmul.f32 %v1126, %v1410
        %v1471 = vmul.f32 %v1129, %v1410
        %v1472 = vmul.f32 %v1134, %v1410
        %v1473 = vmul.f32 %v1137, %v1410
        %v1474 = vmul.f32 %v1142, %v1410
        %v1475 = vmul.f32 %v1145, %v1410
        %v1476 = vmul.f32 %v1150, %v1410
        %v1477 = vmul.f32 %v1153, %v1410
        %v1478 = vmul.f32 %v1158, %v1410
        %v1479 = vmul.f32 %v1161, %v1410
        %v1480 = vmul.f32 %v1166, %v1410
        %v1481 = vmul.f32 %v1169, %v1410
        %v1482 = vmul.f32 %v1174, %v1410
        %v1483 = vmul.f32 %v1177, %v1410
        %v1484 = vmul.f32 %v1182, %v1410
        %v1485 = vmul.f32 %v1185, %v1410
        %v1486 = vmul.f32 %v1190, %v1410
        %v1487 = vmul.f32 %v1193, %v1410
        %v1488 = vmul.f32 %v1198, %v1410
        %v1489 = vmul.f32 %v1201, %v1410
        %v1490 = vmul.f32 %v1206, %v1410
        %v1491 = vmul.f32 %v1209, %v1410
        %v1492 = vmul.f32 %v1214, %v1410
        %v1493 = vmul.f32 %v1217, %v1410
        %v1494 = vmul.f32 %v1222, %v1410
        %v1495 = vmul.f32 %v1225, %v1410
        %v1496 = vmul.f32 %v1230, %v1410
        %v1497 = vmul.f32 %v1233, %v1410
        %v1498 = vmul.f32 %v1238, %v1410
        %v1499 = vmul.f32 %v1241, %v1410
        %v1500 = vmul.f32 %v1246, %v1410
        %v1501 = vmul.f32 %v1249, %v1410
        %v1502 = vmul.f32 %v1254, %v1410
        %v1503 = vmul.f32 %v1257, %v1410
        %v1504 = vmul.f32 %v1262, %v1410
        %v1505 = vmul.f32 %v1265, %v1410
        %v1506 = vmul.f32 %v1270, %v1410
        %v1507 = vmul.f32 %v1273, %v1410
        %v1508 = vmul.f32 %v1278, %v1410
        %v1509 = vmul.f32 %v1281, %v1410
        %v1510 = vmul.f32 %v1286, %v1410
        %v1511 = vmul.f32 %v1289, %v1410
        %v1512 = vmul.f32 %v1294, %v1410
        %v1513 = vmul.f32 %v1297, %v1410
        %v1514 = vmul.f32 %v1302, %v1410
        %v1515 = vmul.f32 %v1305, %v1410
        %v1516 = vmul.f32 %v1310, %v1410
        %v1517 = vmul.f32 %v1313, %v1410
        %v1518 = vmul.f32 %v1318, %v1410
        %v1519 = vmul.f32 %v1321, %v1410
        %v1520 = vmul.f32 %v1326, %v1410
        %v1521 = vmul.f32 %v1329, %v1410
        %v1522 = vmul.f32 %v1334, %v1410
        %v1523 = vmul.f32 %v1337, %v1410
        %v1524 = vmul.f32 %v1342, %v1410
        %v1525 = vmul.f32 %v1345, %v1410
        %v1526 = vmul.f32 %v1350, %v1410
        %v1527 = vmul.f32 %v1353, %v1410
        %v1528 = vmul.f32 %v1358, %v1410
        %v1529 = vmul.f32 %v1361, %v1410
        %v1530 = vmul.f32 %v1366, %v1410
        %v1531 = vmul.f32 %v1369, %v1410
        %v1532 = vmul.f32 %v1374, %v1410
        %v1533 = vmul.f32 %v1377, %v1410
        %v1534 = vmul.f32 %v1382, %v1410
        %v1535 = vmul.f32 %v1385, %v1410
        %v1536 = vmul.f32 %v1390, %v1410
        %v1537 = vmul.f32 %v1393, %v1410
        %v1538 = vmul.f32 %v1398, %v1410
        %v1539 = vmul.f32 %v1401, %v1410
        %v1541 = vlaneseq
        %v1542 = vshrl.u32 %v1541, 7
        %v1543 = vsub.s32 0, %v1542
        %v1544 = vrot.slane %v1405, %v1543
        %v1546 = vadd.f32 %v1412, %v1544
        %v1547 = vadd.f32 %v1413, %v1544
        %v1548 = vadd.f32 %v1414, %v1544
        %v1549 = vadd.f32 %v1415, %v1544
        %v1550 = vadd.f32 %v1416, %v1544
        %v1551 = vadd.f32 %v1417, %v1544
        %v1552 = vadd.f32 %v1418, %v1544
        %v1553 = vadd.f32 %v1419, %v1544
        %v1554 = vadd.f32 %v1420, %v1544
        %v1555 = vadd.f32 %v1421, %v1544
        %v1556 = vadd.f32 %v1422, %v1544
        %v1557 = vadd.f32 %v1423, %v1544
        %v1558 = vadd.f32 %v1424, %v1544
        %v1559 = vadd.f32 %v1425, %v1544
        %v1560 = vadd.f32 %v1426, %v1544
        %v1561 = vadd.f32 %v1427, %v1544
        %v1562 = vadd.f32 %v1428, %v1544
        %v1563 = vadd.f32 %v1429, %v1544
        %v1564 = vadd.f32 %v1430, %v1544
        %v1565 = vadd.f32 %v1431, %v1544
        %v1566 = vadd.f32 %v1432, %v1544
        %v1567 = vadd.f32 %v1433, %v1544
        %v1568 = vadd.f32 %v1434, %v1544
        %v1569 = vadd.f32 %v1435, %v1544
        %v1570 = vadd.f32 %v1436, %v1544
        %v1571 = vadd.f32 %v1437, %v1544
        %v1572 = vadd.f32 %v1438, %v1544
        %v1573 = vadd.f32 %v1439, %v1544
        %v1574 = vadd.f32 %v1440, %v1544
        %v1575 = vadd.f32 %v1441, %v1544
        %v1576 = vadd.f32 %v1442, %v1544
        %v1577 = vadd.f32 %v1443, %v1544
        %v1578 = vadd.f32 %v1444, %v1544
        %v1579 = vadd.f32 %v1445, %v1544
        %v1580 = vadd.f32 %v1446, %v1544
        %v1581 = vadd.f32 %v1447, %v1544
        %v1582 = vadd.f32 %v1448, %v1544
        %v1583 = vadd.f32 %v1449, %v1544
        %v1584 = vadd.f32 %v1450, %v1544
        %v1585 = vadd.f32 %v1451, %v1544
        %v1586 = vadd.f32 %v1452, %v1544
        %v1587 = vadd.f32 %v1453, %v1544
        %v1588 = vadd.f32 %v1454, %v1544
        %v1589 = vadd.f32 %v1455, %v1544
        %v1590 = vadd.f32 %v1456, %v1544
        %v1591 = vadd.f32 %v1457, %v1544
        %v1592 = vadd.f32 %v1458, %v1544
        %v1593 = vadd.f32 %v1459, %v1544
        %v1594 = vadd.f32 %v1460, %v1544
        %v1595 = vadd.f32 %v1461, %v1544
        %v1596 = vadd.f32 %v1462, %v1544
        %v1597 = vadd.f32 %v1463, %v1544
        %v1598 = vadd.f32 %v1464, %v1544
        %v1599 = vadd.f32 %v1465, %v1544
        %v1600 = vadd.f32 %v1466, %v1544
        %v1601 = vadd.f32 %v1467, %v1544
        %v1602 = vadd.f32 %v1468, %v1544
        %v1603 = vadd.f32 %v1469, %v1544
        %v1604 = vadd.f32 %v1470, %v1544
        %v1605 = vadd.f32 %v1471, %v1544
        %v1606 = vadd.f32 %v1472, %v1544
        %v1607 = vadd.f32 %v1473, %v1544
        %v1608 = vadd.f32 %v1474, %v1544
        %v1609 = vadd.f32 %v1475, %v1544
        %v1610 = vadd.f32 %v1476, %v1544
        %v1611 = vadd.f32 %v1477, %v1544
        %v1612 = vadd.f32 %v1478, %v1544
        %v1613 = vadd.f32 %v1479, %v1544
        %v1614 = vadd.f32 %v1480, %v1544
        %v1615 = vadd.f32 %v1481, %v1544
        %v1616 = vadd.f32 %v1482, %v1544
        %v1617 = vadd.f32 %v1483, %v1544
        %v1618 = vadd.f32 %v1484, %v1544
        %v1619 = vadd.f32 %v1485, %v1544
        %v1620 = vadd.f32 %v1486, %v1544
        %v1621 = vadd.f32 %v1487, %v1544
        %v1622 = vadd.f32 %v1488, %v1544
        %v1623 = vadd.f32 %v1489, %v1544
        %v1624 = vadd.f32 %v1490, %v1544
        %v1625 = vadd.f32 %v1491, %v1544
        %v1626 = vadd.f32 %v1492, %v1544
        %v1627 = vadd.f32 %v1493, %v1544
        %v1628 = vadd.f32 %v1494, %v1544
        %v1629 = vadd.f32 %v1495, %v1544
        %v1630 = vadd.f32 %v1496, %v1544
        %v1631 = vadd.f32 %v1497, %v1544
        %v1632 = vadd.f32 %v1498, %v1544
        %v1633 = vadd.f32 %v1499, %v1544
        %v1634 = vadd.f32 %v1500, %v1544
        %v1635 = vadd.f32 %v1501, %v1544
        %v1636 = vadd.f32 %v1502, %v1544
        %v1637 = vadd.f32 %v1503, %v1544
        %v1638 = vadd.f32 %v1504, %v1544
        %v1639 = vadd.f32 %v1505, %v1544
        %v1640 = vadd.f32 %v1506, %v1544
        %v1641 = vadd.f32 %v1507, %v1544
        %v1642 = vadd.f32 %v1508, %v1544
        %v1643 = vadd.f32 %v1509, %v1544
        %v1644 = vadd.f32 %v1510, %v1544
        %v1645 = vadd.f32 %v1511, %v1544
        %v1646 = vadd.f32 %v1512, %v1544
        %v1647 = vadd.f32 %v1513, %v1544
        %v1648 = vadd.f32 %v1514, %v1544
        %v1649 = vadd.f32 %v1515, %v1544
        %v1650 = vadd.f32 %v1516, %v1544
        %v1651 = vadd.f32 %v1517, %v1544
        %v1652 = vadd.f32 %v1518, %v1544
        %v1653 = vadd.f32 %v1519, %v1544
        %v1654 = vadd.f32 %v1520, %v1544
        %v1655 = vadd.f32 %v1521, %v1544
        %v1656 = vadd.f32 %v1522, %v1544
        %v1657 = vadd.f32 %v1523, %v1544
        %v1658 = vadd.f32 %v1524, %v1544
        %v1659 = vadd.f32 %v1525, %v1544
        %v1660 = vadd.f32 %v1526, %v1544
        %v1661 = vadd.f32 %v1527, %v1544
        %v1662 = vadd.f32 %v1528, %v1544
        %v1663 = vadd.f32 %v1529, %v1544
        %v1664 = vadd.f32 %v1530, %v1544
        %v1665 = vadd.f32 %v1531, %v1544
        %v1666 = vadd.f32 %v1532, %v1544
        %v1667 = vadd.f32 %v1533, %v1544
        %v1668 = vadd.f32 %v1534, %v1544
        %v1669 = vadd.f32 %v1535, %v1544
        %v1670 = vadd.f32 %v1536, %v1544
        %v1671 = vadd.f32 %v1537, %v1544
        %v1672 = vadd.f32 %v1538, %v1544
        %v1673 = vadd.f32 %v1539, %v1544
        %vm1674 = vcmp.gt.f32.partialorder %v1546, 0.0
        %vm1675 = vcmp.gt.f32.partialorder %v1547, 0.0
        %vm1676 = vcmp.gt.f32.partialorder %v1548, 0.0
        %vm1677 = vcmp.gt.f32.partialorder %v1549, 0.0
        %vm1678 = vcmp.gt.f32.partialorder %v1550, 0.0
        %vm1679 = vcmp.gt.f32.partialorder %v1551, 0.0
        %vm1680 = vcmp.gt.f32.partialorder %v1552, 0.0
        %vm1681 = vcmp.gt.f32.partialorder %v1553, 0.0
        %vm1682 = vcmp.gt.f32.partialorder %v1554, 0.0
        %vm1683 = vcmp.gt.f32.partialorder %v1555, 0.0
        %vm1684 = vcmp.gt.f32.partialorder %v1556, 0.0
        %vm1685 = vcmp.gt.f32.partialorder %v1557, 0.0
        %vm1686 = vcmp.gt.f32.partialorder %v1558, 0.0
        %vm1687 = vcmp.gt.f32.partialorder %v1559, 0.0
        %vm1688 = vcmp.gt.f32.partialorder %v1560, 0.0
        %vm1689 = vcmp.gt.f32.partialorder %v1561, 0.0
        %vm1690 = vcmp.gt.f32.partialorder %v1562, 0.0
        %vm1691 = vcmp.gt.f32.partialorder %v1563, 0.0
        %vm1692 = vcmp.gt.f32.partialorder %v1564, 0.0
        %vm1693 = vcmp.gt.f32.partialorder %v1565, 0.0
        %vm1694 = vcmp.gt.f32.partialorder %v1566, 0.0
        %vm1695 = vcmp.gt.f32.partialorder %v1567, 0.0
        %vm1696 = vcmp.gt.f32.partialorder %v1568, 0.0
        %vm1697 = vcmp.gt.f32.partialorder %v1569, 0.0
        %vm1698 = vcmp.gt.f32.partialorder %v1570, 0.0
        %vm1699 = vcmp.gt.f32.partialorder %v1571, 0.0
        %vm1700 = vcmp.gt.f32.partialorder %v1572, 0.0
        %vm1701 = vcmp.gt.f32.partialorder %v1573, 0.0
        %vm1702 = vcmp.gt.f32.partialorder %v1574, 0.0
        %vm1703 = vcmp.gt.f32.partialorder %v1575, 0.0
        %vm1704 = vcmp.gt.f32.partialorder %v1576, 0.0
        %vm1705 = vcmp.gt.f32.partialorder %v1577, 0.0
        %vm1706 = vcmp.gt.f32.partialorder %v1578, 0.0
        %vm1707 = vcmp.gt.f32.partialorder %v1579, 0.0
        %vm1708 = vcmp.gt.f32.partialorder %v1580, 0.0
        %vm1709 = vcmp.gt.f32.partialorder %v1581, 0.0
        %vm1710 = vcmp.gt.f32.partialorder %v1582, 0.0
        %vm1711 = vcmp.gt.f32.partialorder %v1583, 0.0
        %vm1712 = vcmp.gt.f32.partialorder %v1584, 0.0
        %vm1713 = vcmp.gt.f32.partialorder %v1585, 0.0
        %vm1714 = vcmp.gt.f32.partialorder %v1586, 0.0
        %vm1715 = vcmp.gt.f32.partialorder %v1587, 0.0
        %vm1716 = vcmp.gt.f32.partialorder %v1588, 0.0
        %vm1717 = vcmp.gt.f32.partialorder %v1589, 0.0
        %vm1718 = vcmp.gt.f32.partialorder %v1590, 0.0
        %vm1719 = vcmp.gt.f32.partialorder %v1591, 0.0
        %vm1720 = vcmp.gt.f32.partialorder %v1592, 0.0
        %vm1721 = vcmp.gt.f32.partialorder %v1593, 0.0
        %vm1722 = vcmp.gt.f32.partialorder %v1594, 0.0
        %vm1723 = vcmp.gt.f32.partialorder %v1595, 0.0
        %vm1724 = vcmp.gt.f32.partialorder %v1596, 0.0
        %vm1725 = vcmp.gt.f32.partialorder %v1597, 0.0
        %vm1726 = vcmp.gt.f32.partialorder %v1598, 0.0
        %vm1727 = vcmp.gt.f32.partialorder %v1599, 0.0
        %vm1728 = vcmp.gt.f32.partialorder %v1600, 0.0
        %vm1729 = vcmp.gt.f32.partialorder %v1601, 0.0
        %vm1730 = vcmp.gt.f32.partialorder %v1602, 0.0
        %vm1731 = vcmp.gt.f32.partialorder %v1603, 0.0
        %vm1732 = vcmp.gt.f32.partialorder %v1604, 0.0
        %vm1733 = vcmp.gt.f32.partialorder %v1605, 0.0
        %vm1734 = vcmp.gt.f32.partialorder %v1606, 0.0
        %vm1735 = vcmp.gt.f32.partialorder %v1607, 0.0
        %vm1736 = vcmp.gt.f32.partialorder %v1608, 0.0
        %vm1737 = vcmp.gt.f32.partialorder %v1609, 0.0
        %vm1738 = vcmp.gt.f32.partialorder %v1610, 0.0
        %vm1739 = vcmp.gt.f32.partialorder %v1611, 0.0
        %vm1740 = vcmp.gt.f32.partialorder %v1612, 0.0
        %vm1741 = vcmp.gt.f32.partialorder %v1613, 0.0
        %vm1742 = vcmp.gt.f32.partialorder %v1614, 0.0
        %vm1743 = vcmp.gt.f32.partialorder %v1615, 0.0
        %vm1744 = vcmp.gt.f32.partialorder %v1616, 0.0
        %vm1745 = vcmp.gt.f32.partialorder %v1617, 0.0
        %vm1746 = vcmp.gt.f32.partialorder %v1618, 0.0
        %vm1747 = vcmp.gt.f32.partialorder %v1619, 0.0
        %vm1748 = vcmp.gt.f32.partialorder %v1620, 0.0
        %vm1749 = vcmp.gt.f32.partialorder %v1621, 0.0
        %vm1750 = vcmp.gt.f32.partialorder %v1622, 0.0
        %vm1751 = vcmp.gt.f32.partialorder %v1623, 0.0
        %vm1752 = vcmp.gt.f32.partialorder %v1624, 0.0
        %vm1753 = vcmp.gt.f32.partialorder %v1625, 0.0
        %vm1754 = vcmp.gt.f32.partialorder %v1626, 0.0
        %vm1755 = vcmp.gt.f32.partialorder %v1627, 0.0
        %vm1756 = vcmp.gt.f32.partialorder %v1628, 0.0
        %vm1757 = vcmp.gt.f32.partialorder %v1629, 0.0
        %vm1758 = vcmp.gt.f32.partialorder %v1630, 0.0
        %vm1759 = vcmp.gt.f32.partialorder %v1631, 0.0
        %vm1760 = vcmp.gt.f32.partialorder %v1632, 0.0
        %vm1761 = vcmp.gt.f32.partialorder %v1633, 0.0
        %vm1762 = vcmp.gt.f32.partialorder %v1634, 0.0
        %vm1763 = vcmp.gt.f32.partialorder %v1635, 0.0
        %vm1764 = vcmp.gt.f32.partialorder %v1636, 0.0
        %vm1765 = vcmp.gt.f32.partialorder %v1637, 0.0
        %vm1766 = vcmp.gt.f32.partialorder %v1638, 0.0
        %vm1767 = vcmp.gt.f32.partialorder %v1639, 0.0
        %vm1768 = vcmp.gt.f32.partialorder %v1640, 0.0
        %vm1769 = vcmp.gt.f32.partialorder %v1641, 0.0
        %vm1770 = vcmp.gt.f32.partialorder %v1642, 0.0
        %vm1771 = vcmp.gt.f32.partialorder %v1643, 0.0
        %vm1772 = vcmp.gt.f32.partialorder %v1644, 0.0
        %vm1773 = vcmp.gt.f32.partialorder %v1645, 0.0
        %vm1774 = vcmp.gt.f32.partialorder %v1646, 0.0
        %vm1775 = vcmp.gt.f32.partialorder %v1647, 0.0
        %vm1776 = vcmp.gt.f32.partialorder %v1648, 0.0
        %vm1777 = vcmp.gt.f32.partialorder %v1649, 0.0
        %vm1778 = vcmp.gt.f32.partialorder %v1650, 0.0
        %vm1779 = vcmp.gt.f32.partialorder %v1651, 0.0
        %vm1780 = vcmp.gt.f32.partialorder %v1652, 0.0
        %vm1781 = vcmp.gt.f32.partialorder %v1653, 0.0
        %vm1782 = vcmp.gt.f32.partialorder %v1654, 0.0
        %vm1783 = vcmp.gt.f32.partialorder %v1655, 0.0
        %vm1784 = vcmp.gt.f32.partialorder %v1656, 0.0
        %vm1785 = vcmp.gt.f32.partialorder %v1657, 0.0
        %vm1786 = vcmp.gt.f32.partialorder %v1658, 0.0
        %vm1787 = vcmp.gt.f32.partialorder %v1659, 0.0
        %vm1788 = vcmp.gt.f32.partialorder %v1660, 0.0
        %vm1789 = vcmp.gt.f32.partialorder %v1661, 0.0
        %vm1790 = vcmp.gt.f32.partialorder %v1662, 0.0
        %vm1791 = vcmp.gt.f32.partialorder %v1663, 0.0
        %vm1792 = vcmp.gt.f32.partialorder %v1664, 0.0
        %vm1793 = vcmp.gt.f32.partialorder %v1665, 0.0
        %vm1794 = vcmp.gt.f32.partialorder %v1666, 0.0
        %vm1795 = vcmp.gt.f32.partialorder %v1667, 0.0
        %vm1796 = vcmp.gt.f32.partialorder %v1668, 0.0
        %vm1797 = vcmp.gt.f32.partialorder %v1669, 0.0
        %vm1798 = vcmp.gt.f32.partialorder %v1670, 0.0
        %vm1799 = vcmp.gt.f32.partialorder %v1671, 0.0
        %vm1800 = vcmp.gt.f32.partialorder %v1672, 0.0
        %vm1801 = vcmp.gt.f32.partialorder %v1673, 0.0
        %v1802 = vmul.f32 %v1546, 0.2
        %v1803 = vmul.f32 %v1547, 0.2
        %v1804 = vmul.f32 %v1548, 0.2
        %v1805 = vmul.f32 %v1549, 0.2
        %v1806 = vmul.f32 %v1550, 0.2
        %v1807 = vmul.f32 %v1551, 0.2
        %v1808 = vmul.f32 %v1552, 0.2
        %v1809 = vmul.f32 %v1553, 0.2
        %v1810 = vmul.f32 %v1554, 0.2
        %v1811 = vmul.f32 %v1555, 0.2
        %v1812 = vmul.f32 %v1556, 0.2
        %v1813 = vmul.f32 %v1557, 0.2
        %v1814 = vmul.f32 %v1558, 0.2
        %v1815 = vmul.f32 %v1559, 0.2
        %v1816 = vmul.f32 %v1560, 0.2
        %v1817 = vmul.f32 %v1561, 0.2
        %v1818 = vmul.f32 %v1562, 0.2
        %v1819 = vmul.f32 %v1563, 0.2
        %v1820 = vmul.f32 %v1564, 0.2
        %v1821 = vmul.f32 %v1565, 0.2
        %v1822 = vmul.f32 %v1566, 0.2
        %v1823 = vmul.f32 %v1567, 0.2
        %v1824 = vmul.f32 %v1568, 0.2
        %v1825 = vmul.f32 %v1569, 0.2
        %v1826 = vmul.f32 %v1570, 0.2
        %v1827 = vmul.f32 %v1571, 0.2
        %v1828 = vmul.f32 %v1572, 0.2
        %v1829 = vmul.f32 %v1573, 0.2
        %v1830 = vmul.f32 %v1574, 0.2
        %v1831 = vmul.f32 %v1575, 0.2
        %v1832 = vmul.f32 %v1576, 0.2
        %v1833 = vmul.f32 %v1577, 0.2
        %v1834 = vmul.f32 %v1578, 0.2
        %v1835 = vmul.f32 %v1579, 0.2
        %v1836 = vmul.f32 %v1580, 0.2
        %v1837 = vmul.f32 %v1581, 0.2
        %v1838 = vmul.f32 %v1582, 0.2
        %v1839 = vmul.f32 %v1583, 0.2
        %v1840 = vmul.f32 %v1584, 0.2
        %v1841 = vmul.f32 %v1585, 0.2
        %v1842 = vmul.f32 %v1586, 0.2
        %v1843 = vmul.f32 %v1587, 0.2
        %v1844 = vmul.f32 %v1588, 0.2
        %v1845 = vmul.f32 %v1589, 0.2
        %v1846 = vmul.f32 %v1590, 0.2
        %v1847 = vmul.f32 %v1591, 0.2
        %v1848 = vmul.f32 %v1592, 0.2
        %v1849 = vmul.f32 %v1593, 0.2
        %v1850 = vmul.f32 %v1594, 0.2
        %v1851 = vmul.f32 %v1595, 0.2
        %v1852 = vmul.f32 %v1596, 0.2
        %v1853 = vmul.f32 %v1597, 0.2
        %v1854 = vmul.f32 %v1598, 0.2
        %v1855 = vmul.f32 %v1599, 0.2
        %v1856 = vmul.f32 %v1600, 0.2
        %v1857 = vmul.f32 %v1601, 0.2
        %v1858 = vmul.f32 %v1602, 0.2
        %v1859 = vmul.f32 %v1603, 0.2
        %v1860 = vmul.f32 %v1604, 0.2
        %v1861 = vmul.f32 %v1605, 0.2
        %v1862 = vmul.f32 %v1606, 0.2
        %v1863 = vmul.f32 %v1607, 0.2
        %v1864 = vmul.f32 %v1608, 0.2
        %v1865 = vmul.f32 %v1609, 0.2
        %v1866 = vmul.f32 %v1610, 0.2
        %v1867 = vmul.f32 %v1611, 0.2
        %v1868 = vmul.f32 %v1612, 0.2
        %v1869 = vmul.f32 %v1613, 0.2
        %v1870 = vmul.f32 %v1614, 0.2
        %v1871 = vmul.f32 %v1615, 0.2
        %v1872 = vmul.f32 %v1616, 0.2
        %v1873 = vmul.f32 %v1617, 0.2
        %v1874 = vmul.f32 %v1618, 0.2
        %v1875 = vmul.f32 %v1619, 0.2
        %v1876 = vmul.f32 %v1620, 0.2
        %v1877 = vmul.f32 %v1621, 0.2
        %v1878 = vmul.f32 %v1622, 0.2
        %v1879 = vmul.f32 %v1623, 0.2
        %v1880 = vmul.f32 %v1624, 0.2
        %v1881 = vmul.f32 %v1625, 0.2
        %v1882 = vmul.f32 %v1626, 0.2
        %v1883 = vmul.f32 %v1627, 0.2
        %v1884 = vmul.f32 %v1628, 0.2
        %v1885 = vmul.f32 %v1629, 0.2
        %v1886 = vmul.f32 %v1630, 0.2
        %v1887 = vmul.f32 %v1631, 0.2
        %v1888 = vmul.f32 %v1632, 0.2
        %v1889 = vmul.f32 %v1633, 0.2
        %v1890 = vmul.f32 %v1634, 0.2
        %v1891 = vmul.f32 %v1635, 0.2
        %v1892 = vmul.f32 %v1636, 0.2
        %v1893 = vmul.f32 %v1637, 0.2
        %v1894 = vmul.f32 %v1638, 0.2
        %v1895 = vmul.f32 %v1639, 0.2
        %v1896 = vmul.f32 %v1640, 0.2
        %v1897 = vmul.f32 %v1641, 0.2
        %v1898 = vmul.f32 %v1642, 0.2
        %v1899 = vmul.f32 %v1643, 0.2
        %v1900 = vmul.f32 %v1644, 0.2
        %v1901 = vmul.f32 %v1645, 0.2
        %v1902 = vmul.f32 %v1646, 0.2
        %v1903 = vmul.f32 %v1647, 0.2
        %v1904 = vmul.f32 %v1648, 0.2
        %v1905 = vmul.f32 %v1649, 0.2
        %v1906 = vmul.f32 %v1650, 0.2
        %v1907 = vmul.f32 %v1651, 0.2
        %v1908 = vmul.f32 %v1652, 0.2
        %v1909 = vmul.f32 %v1653, 0.2
        %v1910 = vmul.f32 %v1654, 0.2
        %v1911 = vmul.f32 %v1655, 0.2
        %v1912 = vmul.f32 %v1656, 0.2
        %v1913 = vmul.f32 %v1657, 0.2
        %v1914 = vmul.f32 %v1658, 0.2
        %v1915 = vmul.f32 %v1659, 0.2
        %v1916 = vmul.f32 %v1660, 0.2
        %v1917 = vmul.f32 %v1661, 0.2
        %v1918 = vmul.f32 %v1662, 0.2
        %v1919 = vmul.f32 %v1663, 0.2
        %v1920 = vmul.f32 %v1664, 0.2
        %v1921 = vmul.f32 %v1665, 0.2
        %v1922 = vmul.f32 %v1666, 0.2
        %v1923 = vmul.f32 %v1667, 0.2
        %v1924 = vmul.f32 %v1668, 0.2
        %v1925 = vmul.f32 %v1669, 0.2
        %v1926 = vmul.f32 %v1670, 0.2
        %v1927 = vmul.f32 %v1671, 0.2
        %v1928 = vmul.f32 %v1672, 0.2
        %v1929 = vmul.f32 %v1673, 0.2
        %v1930 = vsel %vm1674, %v1546, %v1802
        %v1931 = vsel %vm1675, %v1547, %v1803
        %v1932 = vsel %vm1676, %v1548, %v1804
        %v1933 = vsel %vm1677, %v1549, %v1805
        %v1934 = vsel %vm1678, %v1550, %v1806
        %v1935 = vsel %vm1679, %v1551, %v1807
        %v1936 = vsel %vm1680, %v1552, %v1808
        %v1937 = vsel %vm1681, %v1553, %v1809
        %v1938 = vsel %vm1682, %v1554, %v1810
        %v1939 = vsel %vm1683, %v1555, %v1811
        %v1940 = vsel %vm1684, %v1556, %v1812
        %v1941 = vsel %vm1685, %v1557, %v1813
        %v1942 = vsel %vm1686, %v1558, %v1814
        %v1943 = vsel %vm1687, %v1559, %v1815
        %v1944 = vsel %vm1688, %v1560, %v1816
        %v1945 = vsel %vm1689, %v1561, %v1817
        %v1946 = vsel %vm1690, %v1562, %v1818
        %v1947 = vsel %vm1691, %v1563, %v1819
        %v1948 = vsel %vm1692, %v1564, %v1820
        %v1949 = vsel %vm1693, %v1565, %v1821
        %v1950 = vsel %vm1694, %v1566, %v1822
        %v1951 = vsel %vm1695, %v1567, %v1823
        %v1952 = vsel %vm1696, %v1568, %v1824
        %v1953 = vsel %vm1697, %v1569, %v1825
        %v1954 = vsel %vm1698, %v1570, %v1826
        %v1955 = vsel %vm1699, %v1571, %v1827
        %v1956 = vsel %vm1700, %v1572, %v1828
        %v1957 = vsel %vm1701, %v1573, %v1829
        %v1958 = vsel %vm1702, %v1574, %v1830
        %v1959 = vsel %vm1703, %v1575, %v1831
        %v1960 = vsel %vm1704, %v1576, %v1832
        %v1961 = vsel %vm1705, %v1577, %v1833
        %v1962 = vsel %vm1706, %v1578, %v1834
        %v1963 = vsel %vm1707, %v1579, %v1835
        %v1964 = vsel %vm1708, %v1580, %v1836
        %v1965 = vsel %vm1709, %v1581, %v1837
        %v1966 = vsel %vm1710, %v1582, %v1838
        %v1967 = vsel %vm1711, %v1583, %v1839
        %v1968 = vsel %vm1712, %v1584, %v1840
        %v1969 = vsel %vm1713, %v1585, %v1841
        %v1970 = vsel %vm1714, %v1586, %v1842
        %v1971 = vsel %vm1715, %v1587, %v1843
        %v1972 = vsel %vm1716, %v1588, %v1844
        %v1973 = vsel %vm1717, %v1589, %v1845
        %v1974 = vsel %vm1718, %v1590, %v1846
        %v1975 = vsel %vm1719, %v1591, %v1847
        %v1976 = vsel %vm1720, %v1592, %v1848
        %v1977 = vsel %vm1721, %v1593, %v1849
        %v1978 = vsel %vm1722, %v1594, %v1850
        %v1979 = vsel %vm1723, %v1595, %v1851
        %v1980 = vsel %vm1724, %v1596, %v1852
        %v1981 = vsel %vm1725, %v1597, %v1853
        %v1982 = vsel %vm1726, %v1598, %v1854
        %v1983 = vsel %vm1727, %v1599, %v1855
        %v1984 = vsel %vm1728, %v1600, %v1856
        %v1985 = vsel %vm1729, %v1601, %v1857
        %v1986 = vsel %vm1730, %v1602, %v1858
        %v1987 = vsel %vm1731, %v1603, %v1859
        %v1988 = vsel %vm1732, %v1604, %v1860
        %v1989 = vsel %vm1733, %v1605, %v1861
        %v1990 = vsel %vm1734, %v1606, %v1862
        %v1991 = vsel %vm1735, %v1607, %v1863
        %v1992 = vsel %vm1736, %v1608, %v1864
        %v1993 = vsel %vm1737, %v1609, %v1865
        %v1994 = vsel %vm1738, %v1610, %v1866
        %v1995 = vsel %vm1739, %v1611, %v1867
        %v1996 = vsel %vm1740, %v1612, %v1868
        %v1997 = vsel %vm1741, %v1613, %v1869
        %v1998 = vsel %vm1742, %v1614, %v1870
        %v1999 = vsel %vm1743, %v1615, %v1871
        %v2000 = vsel %vm1744, %v1616, %v1872
        %v2001 = vsel %vm1745, %v1617, %v1873
        %v2002 = vsel %vm1746, %v1618, %v1874
        %v2003 = vsel %vm1747, %v1619, %v1875
        %v2004 = vsel %vm1748, %v1620, %v1876
        %v2005 = vsel %vm1749, %v1621, %v1877
        %v2006 = vsel %vm1750, %v1622, %v1878
        %v2007 = vsel %vm1751, %v1623, %v1879
        %v2008 = vsel %vm1752, %v1624, %v1880
        %v2009 = vsel %vm1753, %v1625, %v1881
        %v2010 = vsel %vm1754, %v1626, %v1882
        %v2011 = vsel %vm1755, %v1627, %v1883
        %v2012 = vsel %vm1756, %v1628, %v1884
        %v2013 = vsel %vm1757, %v1629, %v1885
        %v2014 = vsel %vm1758, %v1630, %v1886
        %v2015 = vsel %vm1759, %v1631, %v1887
        %v2016 = vsel %vm1760, %v1632, %v1888
        %v2017 = vsel %vm1761, %v1633, %v1889
        %v2018 = vsel %vm1762, %v1634, %v1890
        %v2019 = vsel %vm1763, %v1635, %v1891
        %v2020 = vsel %vm1764, %v1636, %v1892
        %v2021 = vsel %vm1765, %v1637, %v1893
        %v2022 = vsel %vm1766, %v1638, %v1894
        %v2023 = vsel %vm1767, %v1639, %v1895
        %v2024 = vsel %vm1768, %v1640, %v1896
        %v2025 = vsel %vm1769, %v1641, %v1897
        %v2026 = vsel %vm1770, %v1642, %v1898
        %v2027 = vsel %vm1771, %v1643, %v1899
        %v2028 = vsel %vm1772, %v1644, %v1900
        %v2029 = vsel %vm1773, %v1645, %v1901
        %v2030 = vsel %vm1774, %v1646, %v1902
        %v2031 = vsel %vm1775, %v1647, %v1903
        %v2032 = vsel %vm1776, %v1648, %v1904
        %v2033 = vsel %vm1777, %v1649, %v1905
        %v2034 = vsel %vm1778, %v1650, %v1906
        %v2035 = vsel %vm1779, %v1651, %v1907
        %v2036 = vsel %vm1780, %v1652, %v1908
        %v2037 = vsel %vm1781, %v1653, %v1909
        %v2038 = vsel %vm1782, %v1654, %v1910
        %v2039 = vsel %vm1783, %v1655, %v1911
        %v2040 = vsel %vm1784, %v1656, %v1912
        %v2041 = vsel %vm1785, %v1657, %v1913
        %v2042 = vsel %vm1786, %v1658, %v1914
        %v2043 = vsel %vm1787, %v1659, %v1915
        %v2044 = vsel %vm1788, %v1660, %v1916
        %v2045 = vsel %vm1789, %v1661, %v1917
        %v2046 = vsel %vm1790, %v1662, %v1918
        %v2047 = vsel %vm1791, %v1663, %v1919
        %v2048 = vsel %vm1792, %v1664, %v1920
        %v2049 = vsel %vm1793, %v1665, %v1921
        %v2050 = vsel %vm1794, %v1666, %v1922
        %v2051 = vsel %vm1795, %v1667, %v1923
        %v2052 = vsel %vm1796, %v1668, %v1924
        %v2053 = vsel %vm1797, %v1669, %v1925
        %v2054 = vsel %vm1798, %v1670, %v1926
        %v2055 = vsel %vm1799, %v1671, %v1927
        %v2056 = vsel %vm1800, %v1672, %v1928
        %v2057 = vsel %vm1801, %v1673, %v1929
        %v2058 = vpack.c.bf16 %v1931, %v1930
        %v2059 = vpack.c.bf16 %v1933, %v1932
        %v2060 = vpack.c.bf16 %v1935, %v1934
        %v2061 = vpack.c.bf16 %v1937, %v1936
        %v2062 = vpack.c.bf16 %v1939, %v1938
        %v2063 = vpack.c.bf16 %v1941, %v1940
        %v2064 = vpack.c.bf16 %v1943, %v1942
        %v2065 = vpack.c.bf16 %v1945, %v1944
        %v2066 = vpack.c.bf16 %v1947, %v1946
        %v2067 = vpack.c.bf16 %v1949, %v1948
        %v2068 = vpack.c.bf16 %v1951, %v1950
        %v2069 = vpack.c.bf16 %v1953, %v1952
        %v2070 = vpack.c.bf16 %v1955, %v1954
        %v2071 = vpack.c.bf16 %v1957, %v1956
        %v2072 = vpack.c.bf16 %v1959, %v1958
        %v2073 = vpack.c.bf16 %v1961, %v1960
        %v2074 = vpack.c.bf16 %v1963, %v1962
        %v2075 = vpack.c.bf16 %v1965, %v1964
        %v2076 = vpack.c.bf16 %v1967, %v1966
        %v2077 = vpack.c.bf16 %v1969, %v1968
        %v2078 = vpack.c.bf16 %v1971, %v1970
        %v2079 = vpack.c.bf16 %v1973, %v1972
        %v2080 = vpack.c.bf16 %v1975, %v1974
        %v2081 = vpack.c.bf16 %v1977, %v1976
        %v2082 = vpack.c.bf16 %v1979, %v1978
        %v2083 = vpack.c.bf16 %v1981, %v1980
        %v2084 = vpack.c.bf16 %v1983, %v1982
        %v2085 = vpack.c.bf16 %v1985, %v1984
        %v2086 = vpack.c.bf16 %v1987, %v1986
        %v2087 = vpack.c.bf16 %v1989, %v1988
        %v2088 = vpack.c.bf16 %v1991, %v1990
        %v2089 = vpack.c.bf16 %v1993, %v1992
        %v2090 = vpack.c.bf16 %v1995, %v1994
        %v2091 = vpack.c.bf16 %v1997, %v1996
        %v2092 = vpack.c.bf16 %v1999, %v1998
        %v2093 = vpack.c.bf16 %v2001, %v2000
        %v2094 = vpack.c.bf16 %v2003, %v2002
        %v2095 = vpack.c.bf16 %v2005, %v2004
        %v2096 = vpack.c.bf16 %v2007, %v2006
        %v2097 = vpack.c.bf16 %v2009, %v2008
        %v2098 = vpack.c.bf16 %v2011, %v2010
        %v2099 = vpack.c.bf16 %v2013, %v2012
        %v2100 = vpack.c.bf16 %v2015, %v2014
        %v2101 = vpack.c.bf16 %v2017, %v2016
        %v2102 = vpack.c.bf16 %v2019, %v2018
        %v2103 = vpack.c.bf16 %v2021, %v2020
        %v2104 = vpack.c.bf16 %v2023, %v2022
        %v2105 = vpack.c.bf16 %v2025, %v2024
        %v2106 = vpack.c.bf16 %v2027, %v2026
        %v2107 = vpack.c.bf16 %v2029, %v2028
        %v2108 = vpack.c.bf16 %v2031, %v2030
        %v2109 = vpack.c.bf16 %v2033, %v2032
        %v2110 = vpack.c.bf16 %v2035, %v2034
        %v2111 = vpack.c.bf16 %v2037, %v2036
        %v2112 = vpack.c.bf16 %v2039, %v2038
        %v2113 = vpack.c.bf16 %v2041, %v2040
        %v2114 = vpack.c.bf16 %v2043, %v2042
        %v2115 = vpack.c.bf16 %v2045, %v2044
        %v2116 = vpack.c.bf16 %v2047, %v2046
        %v2117 = vpack.c.bf16 %v2049, %v2048
        %v2118 = vpack.c.bf16 %v2051, %v2050
        %v2119 = vpack.c.bf16 %v2053, %v2052
        %v2120 = vpack.c.bf16 %v2055, %v2054
        %v2121 = vpack.c.bf16 %v2057, %v2056
        %v2186 = vunpack.c.l.b16 %v2058
        %v2187 = vunpack.c.h.b16 %v2058
        %v2188 = vunpack.c.l.b16 %v2059
        %v2189 = vunpack.c.h.b16 %v2059
        %v2190 = vunpack.c.l.b16 %v2060
        %v2191 = vunpack.c.h.b16 %v2060
        %v2192 = vunpack.c.l.b16 %v2061
        %v2193 = vunpack.c.h.b16 %v2061
        %v2194 = vunpack.c.l.b16 %v2062
        %v2195 = vunpack.c.h.b16 %v2062
        %v2196 = vunpack.c.l.b16 %v2063
        %v2197 = vunpack.c.h.b16 %v2063
        %v2198 = vunpack.c.l.b16 %v2064
        %v2199 = vunpack.c.h.b16 %v2064
        %v2200 = vunpack.c.l.b16 %v2065
        %v2201 = vunpack.c.h.b16 %v2065
        %v2202 = vunpack.c.l.b16 %v2066
        %v2203 = vunpack.c.h.b16 %v2066
        %v2204 = vunpack.c.l.b16 %v2067
        %v2205 = vunpack.c.h.b16 %v2067
        %v2206 = vunpack.c.l.b16 %v2068
        %v2207 = vunpack.c.h.b16 %v2068
        %v2208 = vunpack.c.l.b16 %v2069
        %v2209 = vunpack.c.h.b16 %v2069
        %v2210 = vunpack.c.l.b16 %v2070
        %v2211 = vunpack.c.h.b16 %v2070
        %v2212 = vunpack.c.l.b16 %v2071
        %v2213 = vunpack.c.h.b16 %v2071
        %v2214 = vunpack.c.l.b16 %v2072
        %v2215 = vunpack.c.h.b16 %v2072
        %v2216 = vunpack.c.l.b16 %v2073
        %v2217 = vunpack.c.h.b16 %v2073
        %v2218 = vunpack.c.l.b16 %v2074
        %v2219 = vunpack.c.h.b16 %v2074
        %v2220 = vunpack.c.l.b16 %v2075
        %v2221 = vunpack.c.h.b16 %v2075
        %v2222 = vunpack.c.l.b16 %v2076
        %v2223 = vunpack.c.h.b16 %v2076
        %v2224 = vunpack.c.l.b16 %v2077
        %v2225 = vunpack.c.h.b16 %v2077
        %v2226 = vunpack.c.l.b16 %v2078
        %v2227 = vunpack.c.h.b16 %v2078
        %v2228 = vunpack.c.l.b16 %v2079
        %v2229 = vunpack.c.h.b16 %v2079
        %v2230 = vunpack.c.l.b16 %v2080
        %v2231 = vunpack.c.h.b16 %v2080
        %v2232 = vunpack.c.l.b16 %v2081
        %v2233 = vunpack.c.h.b16 %v2081
        %v2234 = vunpack.c.l.b16 %v2082
        %v2235 = vunpack.c.h.b16 %v2082
        %v2236 = vunpack.c.l.b16 %v2083
        %v2237 = vunpack.c.h.b16 %v2083
        %v2238 = vunpack.c.l.b16 %v2084
        %v2239 = vunpack.c.h.b16 %v2084
        %v2240 = vunpack.c.l.b16 %v2085
        %v2241 = vunpack.c.h.b16 %v2085
        %v2242 = vunpack.c.l.b16 %v2086
        %v2243 = vunpack.c.h.b16 %v2086
        %v2244 = vunpack.c.l.b16 %v2087
        %v2245 = vunpack.c.h.b16 %v2087
        %v2246 = vunpack.c.l.b16 %v2088
        %v2247 = vunpack.c.h.b16 %v2088
        %v2248 = vunpack.c.l.b16 %v2089
        %v2249 = vunpack.c.h.b16 %v2089
        %v2250 = vunpack.c.l.b16 %v2090
        %v2251 = vunpack.c.h.b16 %v2090
        %v2252 = vunpack.c.l.b16 %v2091
        %v2253 = vunpack.c.h.b16 %v2091
        %v2254 = vunpack.c.l.b16 %v2092
        %v2255 = vunpack.c.h.b16 %v2092
        %v2256 = vunpack.c.l.b16 %v2093
        %v2257 = vunpack.c.h.b16 %v2093
        %v2258 = vunpack.c.l.b16 %v2094
        %v2259 = vunpack.c.h.b16 %v2094
        %v2260 = vunpack.c.l.b16 %v2095
        %v2261 = vunpack.c.h.b16 %v2095
        %v2262 = vunpack.c.l.b16 %v2096
        %v2263 = vunpack.c.h.b16 %v2096
        %v2264 = vunpack.c.l.b16 %v2097
        %v2265 = vunpack.c.h.b16 %v2097
        %v2266 = vunpack.c.l.b16 %v2098
        %v2267 = vunpack.c.h.b16 %v2098
        %v2268 = vunpack.c.l.b16 %v2099
        %v2269 = vunpack.c.h.b16 %v2099
        %v2270 = vunpack.c.l.b16 %v2100
        %v2271 = vunpack.c.h.b16 %v2100
        %v2272 = vunpack.c.l.b16 %v2101
        %v2273 = vunpack.c.h.b16 %v2101
        %v2274 = vunpack.c.l.b16 %v2102
        %v2275 = vunpack.c.h.b16 %v2102
        %v2276 = vunpack.c.l.b16 %v2103
        %v2277 = vunpack.c.h.b16 %v2103
        %v2278 = vunpack.c.l.b16 %v2104
        %v2279 = vunpack.c.h.b16 %v2104
        %v2280 = vunpack.c.l.b16 %v2105
        %v2281 = vunpack.c.h.b16 %v2105
        %v2282 = vunpack.c.l.b16 %v2106
        %v2283 = vunpack.c.h.b16 %v2106
        %v2284 = vunpack.c.l.b16 %v2107
        %v2285 = vunpack.c.h.b16 %v2107
        %v2286 = vunpack.c.l.b16 %v2108
        %v2287 = vunpack.c.h.b16 %v2108
        %v2288 = vunpack.c.l.b16 %v2109
        %v2289 = vunpack.c.h.b16 %v2109
        %v2290 = vunpack.c.l.b16 %v2110
        %v2291 = vunpack.c.h.b16 %v2110
        %v2292 = vunpack.c.l.b16 %v2111
        %v2293 = vunpack.c.h.b16 %v2111
        %v2294 = vunpack.c.l.b16 %v2112
        %v2295 = vunpack.c.h.b16 %v2112
        %v2296 = vunpack.c.l.b16 %v2113
        %v2297 = vunpack.c.h.b16 %v2113
        %v2298 = vunpack.c.l.b16 %v2114
        %v2299 = vunpack.c.h.b16 %v2114
        %v2300 = vunpack.c.l.b16 %v2115
        %v2301 = vunpack.c.h.b16 %v2115
        %v2302 = vunpack.c.l.b16 %v2116
        %v2303 = vunpack.c.h.b16 %v2116
        %v2304 = vunpack.c.l.b16 %v2117
        %v2305 = vunpack.c.h.b16 %v2117
        %v2306 = vunpack.c.l.b16 %v2118
        %v2307 = vunpack.c.h.b16 %v2118
        %v2308 = vunpack.c.l.b16 %v2119
        %v2309 = vunpack.c.h.b16 %v2119
        %v2310 = vunpack.c.l.b16 %v2120
        %v2311 = vunpack.c.h.b16 %v2120
        %v2312 = vunpack.c.l.b16 %v2121
        %v2313 = vunpack.c.h.b16 %v2121
        %v2314 = vpack.c.b16 %v2186, %v2186
        %v2315 = vpack.c.b16 %v2187, %v2187
        %v2316 = vpack.c.b16 %v2188, %v2188
        %v2317 = vpack.c.b16 %v2189, %v2189
        %v2318 = vpack.c.b16 %v2190, %v2190
        %v2319 = vpack.c.b16 %v2191, %v2191
        %v2320 = vpack.c.b16 %v2192, %v2192
        %v2321 = vpack.c.b16 %v2193, %v2193
        %v2322 = vpack.c.b16 %v2194, %v2194
        %v2323 = vpack.c.b16 %v2195, %v2195
        %v2324 = vpack.c.b16 %v2196, %v2196
        %v2325 = vpack.c.b16 %v2197, %v2197
        %v2326 = vpack.c.b16 %v2198, %v2198
        %v2327 = vpack.c.b16 %v2199, %v2199
        %v2328 = vpack.c.b16 %v2200, %v2200
        %v2329 = vpack.c.b16 %v2201, %v2201
        %v2330 = vpack.c.b16 %v2202, %v2202
        %v2331 = vpack.c.b16 %v2203, %v2203
        %v2332 = vpack.c.b16 %v2204, %v2204
        %v2333 = vpack.c.b16 %v2205, %v2205
        %v2334 = vpack.c.b16 %v2206, %v2206
        %v2335 = vpack.c.b16 %v2207, %v2207
        %v2336 = vpack.c.b16 %v2208, %v2208
        %v2337 = vpack.c.b16 %v2209, %v2209
        %v2338 = vpack.c.b16 %v2210, %v2210
        %v2339 = vpack.c.b16 %v2211, %v2211
        %v2340 = vpack.c.b16 %v2212, %v2212
        %v2341 = vpack.c.b16 %v2213, %v2213
        %v2342 = vpack.c.b16 %v2214, %v2214
        %v2343 = vpack.c.b16 %v2215, %v2215
        %v2344 = vpack.c.b16 %v2216, %v2216
        %v2345 = vpack.c.b16 %v2217, %v2217
        %v2346 = vpack.c.b16 %v2218, %v2218
        %v2347 = vpack.c.b16 %v2219, %v2219
        %v2348 = vpack.c.b16 %v2220, %v2220
        %v2349 = vpack.c.b16 %v2221, %v2221
        %v2350 = vpack.c.b16 %v2222, %v2222
        %v2351 = vpack.c.b16 %v2223, %v2223
        %v2352 = vpack.c.b16 %v2224, %v2224
        %v2353 = vpack.c.b16 %v2225, %v2225
        %v2354 = vpack.c.b16 %v2226, %v2226
        %v2355 = vpack.c.b16 %v2227, %v2227
        %v2356 = vpack.c.b16 %v2228, %v2228
        %v2357 = vpack.c.b16 %v2229, %v2229
        %v2358 = vpack.c.b16 %v2230, %v2230
        %v2359 = vpack.c.b16 %v2231, %v2231
        %v2360 = vpack.c.b16 %v2232, %v2232
        %v2361 = vpack.c.b16 %v2233, %v2233
        %v2362 = vpack.c.b16 %v2234, %v2234
        %v2363 = vpack.c.b16 %v2235, %v2235
        %v2364 = vpack.c.b16 %v2236, %v2236
        %v2365 = vpack.c.b16 %v2237, %v2237
        %v2366 = vpack.c.b16 %v2238, %v2238
        %v2367 = vpack.c.b16 %v2239, %v2239
        %v2368 = vpack.c.b16 %v2240, %v2240
        %v2369 = vpack.c.b16 %v2241, %v2241
        %v2370 = vpack.c.b16 %v2242, %v2242
        %v2371 = vpack.c.b16 %v2243, %v2243
        %v2372 = vpack.c.b16 %v2244, %v2244
        %v2373 = vpack.c.b16 %v2245, %v2245
        %v2374 = vpack.c.b16 %v2246, %v2246
        %v2375 = vpack.c.b16 %v2247, %v2247
        %v2376 = vpack.c.b16 %v2248, %v2248
        %v2377 = vpack.c.b16 %v2249, %v2249
        %v2378 = vpack.c.b16 %v2250, %v2250
        %v2379 = vpack.c.b16 %v2251, %v2251
        %v2380 = vpack.c.b16 %v2252, %v2252
        %v2381 = vpack.c.b16 %v2253, %v2253
        %v2382 = vpack.c.b16 %v2254, %v2254
        %v2383 = vpack.c.b16 %v2255, %v2255
        %v2384 = vpack.c.b16 %v2256, %v2256
        %v2385 = vpack.c.b16 %v2257, %v2257
        %v2386 = vpack.c.b16 %v2258, %v2258
        %v2387 = vpack.c.b16 %v2259, %v2259
        %v2388 = vpack.c.b16 %v2260, %v2260
        %v2389 = vpack.c.b16 %v2261, %v2261
        %v2390 = vpack.c.b16 %v2262, %v2262
        %v2391 = vpack.c.b16 %v2263, %v2263
        %v2392 = vpack.c.b16 %v2264, %v2264
        %v2393 = vpack.c.b16 %v2265, %v2265
        %v2394 = vpack.c.b16 %v2266, %v2266
        %v2395 = vpack.c.b16 %v2267, %v2267
        %v2396 = vpack.c.b16 %v2268, %v2268
        %v2397 = vpack.c.b16 %v2269, %v2269
        %v2398 = vpack.c.b16 %v2270, %v2270
        %v2399 = vpack.c.b16 %v2271, %v2271
        %v2400 = vpack.c.b16 %v2272, %v2272
        %v2401 = vpack.c.b16 %v2273, %v2273
        %v2402 = vpack.c.b16 %v2274, %v2274
        %v2403 = vpack.c.b16 %v2275, %v2275
        %v2404 = vpack.c.b16 %v2276, %v2276
        %v2405 = vpack.c.b16 %v2277, %v2277
        %v2406 = vpack.c.b16 %v2278, %v2278
        %v2407 = vpack.c.b16 %v2279, %v2279
        %v2408 = vpack.c.b16 %v2280, %v2280
        %v2409 = vpack.c.b16 %v2281, %v2281
        %v2410 = vpack.c.b16 %v2282, %v2282
        %v2411 = vpack.c.b16 %v2283, %v2283
        %v2412 = vpack.c.b16 %v2284, %v2284
        %v2413 = vpack.c.b16 %v2285, %v2285
        %v2414 = vpack.c.b16 %v2286, %v2286
        %v2415 = vpack.c.b16 %v2287, %v2287
        %v2416 = vpack.c.b16 %v2288, %v2288
        %v2417 = vpack.c.b16 %v2289, %v2289
        %v2418 = vpack.c.b16 %v2290, %v2290
        %v2419 = vpack.c.b16 %v2291, %v2291
        %v2420 = vpack.c.b16 %v2292, %v2292
        %v2421 = vpack.c.b16 %v2293, %v2293
        %v2422 = vpack.c.b16 %v2294, %v2294
        %v2423 = vpack.c.b16 %v2295, %v2295
        %v2424 = vpack.c.b16 %v2296, %v2296
        %v2425 = vpack.c.b16 %v2297, %v2297
        %v2426 = vpack.c.b16 %v2298, %v2298
        %v2427 = vpack.c.b16 %v2299, %v2299
        %v2428 = vpack.c.b16 %v2300, %v2300
        %v2429 = vpack.c.b16 %v2301, %v2301
        %v2430 = vpack.c.b16 %v2302, %v2302
        %v2431 = vpack.c.b16 %v2303, %v2303
        %v2432 = vpack.c.b16 %v2304, %v2304
        %v2433 = vpack.c.b16 %v2305, %v2305
        %v2434 = vpack.c.b16 %v2306, %v2306
        %v2435 = vpack.c.b16 %v2307, %v2307
        %v2436 = vpack.c.b16 %v2308, %v2308
        %v2437 = vpack.c.b16 %v2309, %v2309
        %v2438 = vpack.c.b16 %v2310, %v2310
        %v2439 = vpack.c.b16 %v2311, %v2311
        %v2440 = vpack.c.b16 %v2312, %v2312
        %v2441 = vpack.c.b16 %v2313, %v2313
        %2570 = vst [vmem:[%s273] sm:$0xf] %v2314
        %2571 = vst [vmem:[%s273 + $0x4] sm:$0xf] %v2315
        %2572 = vst [vmem:[%s273 + $0x8] sm:$0xf] %v2316
        %2573 = vst [vmem:[%s273 + $0xc] sm:$0xf] %v2317
        %2574 = vst [vmem:[%s273 + $0x10] sm:$0xf] %v2318
        %2575 = vst [vmem:[%s273 + $0x14] sm:$0xf] %v2319
        %2576 = vst [vmem:[%s273 + $0x18] sm:$0xf] %v2320
        %2577 = vst [vmem:[%s273 + $0x1c] sm:$0xf] %v2321
        %2578 = vst [vmem:[%s273 + $0x20] sm:$0xf] %v2322
        %2579 = vst [vmem:[%s273 + $0x24] sm:$0xf] %v2323
        %2580 = vst [vmem:[%s273 + $0x28] sm:$0xf] %v2324
        %2581 = vst [vmem:[%s273 + $0x2c] sm:$0xf] %v2325
        %2582 = vst [vmem:[%s273 + $0x30] sm:$0xf] %v2326
        %2583 = vst [vmem:[%s273 + $0x34] sm:$0xf] %v2327
        %2584 = vst [vmem:[%s273 + $0x38] sm:$0xf] %v2328
        %2585 = vst [vmem:[%s273 + $0x3c] sm:$0xf] %v2329
        %2586 = vst [vmem:[%s273 + $0x40] sm:$0xf] %v2330
        %2587 = vst [vmem:[%s273 + $0x44] sm:$0xf] %v2331
        %2588 = vst [vmem:[%s273 + $0x48] sm:$0xf] %v2332
        %2589 = vst [vmem:[%s273 + $0x4c] sm:$0xf] %v2333
        %2590 = vst [vmem:[%s273 + $0x50] sm:$0xf] %v2334
        %2591 = vst [vmem:[%s273 + $0x54] sm:$0xf] %v2335
        %2592 = vst [vmem:[%s273 + $0x58] sm:$0xf] %v2336
        %2593 = vst [vmem:[%s273 + $0x5c] sm:$0xf] %v2337
        %2594 = vst [vmem:[%s273 + $0x60] sm:$0xf] %v2338
        %2595 = vst [vmem:[%s273 + $0x64] sm:$0xf] %v2339
        %2596 = vst [vmem:[%s273 + $0x68] sm:$0xf] %v2340
        %2597 = vst [vmem:[%s273 + $0x6c] sm:$0xf] %v2341
        %2598 = vst [vmem:[%s273 + $0x70] sm:$0xf] %v2342
        %2599 = vst [vmem:[%s273 + $0x74] sm:$0xf] %v2343
        %2600 = vst [vmem:[%s273 + $0x78] sm:$0xf] %v2344
        %2601 = vst [vmem:[%s273 + $0x7c] sm:$0xf] %v2345
        %2602 = vst [vmem:[%s273 + $0x80] sm:$0xf] %v2346
        %2603 = vst [vmem:[%s273 + $0x84] sm:$0xf] %v2347
        %2604 = vst [vmem:[%s273 + $0x88] sm:$0xf] %v2348
        %2605 = vst [vmem:[%s273 + $0x8c] sm:$0xf] %v2349
        %2606 = vst [vmem:[%s273 + $0x90] sm:$0xf] %v2350
        %2607 = vst [vmem:[%s273 + $0x94] sm:$0xf] %v2351
        %2608 = vst [vmem:[%s273 + $0x98] sm:$0xf] %v2352
        %2609 = vst [vmem:[%s273 + $0x9c] sm:$0xf] %v2353
        %2610 = vst [vmem:[%s273 + $0xa0] sm:$0xf] %v2354
        %2611 = vst [vmem:[%s273 + $0xa4] sm:$0xf] %v2355
        %2612 = vst [vmem:[%s273 + $0xa8] sm:$0xf] %v2356
        %2613 = vst [vmem:[%s273 + $0xac] sm:$0xf] %v2357
        %2614 = vst [vmem:[%s273 + $0xb0] sm:$0xf] %v2358
        %2615 = vst [vmem:[%s273 + $0xb4] sm:$0xf] %v2359
        %2616 = vst [vmem:[%s273 + $0xb8] sm:$0xf] %v2360
        %2617 = vst [vmem:[%s273 + $0xbc] sm:$0xf] %v2361
        %2618 = vst [vmem:[%s273 + $0xc0] sm:$0xf] %v2362
        %2619 = vst [vmem:[%s273 + $0xc4] sm:$0xf] %v2363
        %2620 = vst [vmem:[%s273 + $0xc8] sm:$0xf] %v2364
        %2621 = vst [vmem:[%s273 + $0xcc] sm:$0xf] %v2365
        %2622 = vst [vmem:[%s273 + $0xd0] sm:$0xf] %v2366
        %2623 = vst [vmem:[%s273 + $0xd4] sm:$0xf] %v2367
        %2624 = vst [vmem:[%s273 + $0xd8] sm:$0xf] %v2368
        %2625 = vst [vmem:[%s273 + $0xdc] sm:$0xf] %v2369
        %2626 = vst [vmem:[%s273 + $0xe0] sm:$0xf] %v2370
        %2627 = vst [vmem:[%s273 + $0xe4] sm:$0xf] %v2371
        %2628 = vst [vmem:[%s273 + $0xe8] sm:$0xf] %v2372
        %2629 = vst [vmem:[%s273 + $0xec] sm:$0xf] %v2373
        %2630 = vst [vmem:[%s273 + $0xf0] sm:$0xf] %v2374
        %2631 = vst [vmem:[%s273 + $0xf4] sm:$0xf] %v2375
        %2632 = vst [vmem:[%s273 + $0xf8] sm:$0xf] %v2376
        %2633 = vst [vmem:[%s273 + $0xfc] sm:$0xf] %v2377
        %2634 = vst [vmem:[%s273 + $0x100] sm:$0xf] %v2378
        %2635 = vst [vmem:[%s273 + $0x104] sm:$0xf] %v2379
        %2636 = vst [vmem:[%s273 + $0x108] sm:$0xf] %v2380
        %2637 = vst [vmem:[%s273 + $0x10c] sm:$0xf] %v2381
        %2638 = vst [vmem:[%s273 + $0x110] sm:$0xf] %v2382
        %2639 = vst [vmem:[%s273 + $0x114] sm:$0xf] %v2383
        %2640 = vst [vmem:[%s273 + $0x118] sm:$0xf] %v2384
        %2641 = vst [vmem:[%s273 + $0x11c] sm:$0xf] %v2385
        %2642 = vst [vmem:[%s273 + $0x120] sm:$0xf] %v2386
        %2643 = vst [vmem:[%s273 + $0x124] sm:$0xf] %v2387
        %2644 = vst [vmem:[%s273 + $0x128] sm:$0xf] %v2388
        %2645 = vst [vmem:[%s273 + $0x12c] sm:$0xf] %v2389
        %2646 = vst [vmem:[%s273 + $0x130] sm:$0xf] %v2390
        %2647 = vst [vmem:[%s273 + $0x134] sm:$0xf] %v2391
        %2648 = vst [vmem:[%s273 + $0x138] sm:$0xf] %v2392
        %2649 = vst [vmem:[%s273 + $0x13c] sm:$0xf] %v2393
        %2650 = vst [vmem:[%s273 + $0x140] sm:$0xf] %v2394
        %2651 = vst [vmem:[%s273 + $0x144] sm:$0xf] %v2395
        %2652 = vst [vmem:[%s273 + $0x148] sm:$0xf] %v2396
        %2653 = vst [vmem:[%s273 + $0x14c] sm:$0xf] %v2397
        %2654 = vst [vmem:[%s273 + $0x150] sm:$0xf] %v2398
        %2655 = vst [vmem:[%s273 + $0x154] sm:$0xf] %v2399
        %2656 = vst [vmem:[%s273 + $0x158] sm:$0xf] %v2400
        %2657 = vst [vmem:[%s273 + $0x15c] sm:$0xf] %v2401
        %2658 = vst [vmem:[%s273 + $0x160] sm:$0xf] %v2402
        %2659 = vst [vmem:[%s273 + $0x164] sm:$0xf] %v2403
        %2660 = vst [vmem:[%s273 + $0x168] sm:$0xf] %v2404
        %2661 = vst [vmem:[%s273 + $0x16c] sm:$0xf] %v2405
        %2662 = vst [vmem:[%s273 + $0x170] sm:$0xf] %v2406
        %2663 = vst [vmem:[%s273 + $0x174] sm:$0xf] %v2407
        %2664 = vst [vmem:[%s273 + $0x178] sm:$0xf] %v2408
        %2665 = vst [vmem:[%s273 + $0x17c] sm:$0xf] %v2409
        %2666 = vst [vmem:[%s273 + $0x180] sm:$0xf] %v2410
        %2667 = vst [vmem:[%s273 + $0x184] sm:$0xf] %v2411
        %2668 = vst [vmem:[%s273 + $0x188] sm:$0xf] %v2412
        %2669 = vst [vmem:[%s273 + $0x18c] sm:$0xf] %v2413
        %2670 = vst [vmem:[%s273 + $0x190] sm:$0xf] %v2414
        %2671 = vst [vmem:[%s273 + $0x194] sm:$0xf] %v2415
        %2672 = vst [vmem:[%s273 + $0x198] sm:$0xf] %v2416
        %2673 = vst [vmem:[%s273 + $0x19c] sm:$0xf] %v2417
        %2674 = vst [vmem:[%s273 + $0x1a0] sm:$0xf] %v2418
        %2675 = vst [vmem:[%s273 + $0x1a4] sm:$0xf] %v2419
        %2676 = vst [vmem:[%s273 + $0x1a8] sm:$0xf] %v2420
        %2677 = vst [vmem:[%s273 + $0x1ac] sm:$0xf] %v2421
        %2678 = vst [vmem:[%s273 + $0x1b0] sm:$0xf] %v2422
        %2679 = vst [vmem:[%s273 + $0x1b4] sm:$0xf] %v2423
        %2680 = vst [vmem:[%s273 + $0x1b8] sm:$0xf] %v2424
        %2681 = vst [vmem:[%s273 + $0x1bc] sm:$0xf] %v2425
        %2682 = vst [vmem:[%s273 + $0x1c0] sm:$0xf] %v2426
        %2683 = vst [vmem:[%s273 + $0x1c4] sm:$0xf] %v2427
        %2684 = vst [vmem:[%s273 + $0x1c8] sm:$0xf] %v2428
        %2685 = vst [vmem:[%s273 + $0x1cc] sm:$0xf] %v2429
        %2686 = vst [vmem:[%s273 + $0x1d0] sm:$0xf] %v2430
        %2687 = vst [vmem:[%s273 + $0x1d4] sm:$0xf] %v2431
        %2688 = vst [vmem:[%s273 + $0x1d8] sm:$0xf] %v2432
        %2689 = vst [vmem:[%s273 + $0x1dc] sm:$0xf] %v2433
        %2690 = vst [vmem:[%s273 + $0x1e0] sm:$0xf] %v2434
        %2691 = vst [vmem:[%s273 + $0x1e4] sm:$0xf] %v2435
        %2692 = vst [vmem:[%s273 + $0x1e8] sm:$0xf] %v2436
        %2693 = vst [vmem:[%s273 + $0x1ec] sm:$0xf] %v2437
        %2694 = vst [vmem:[%s273 + $0x1f0] sm:$0xf] %v2438
        %2695 = vst [vmem:[%s273 + $0x1f4] sm:$0xf] %v2439
        %2696 = vst [vmem:[%s273 + $0x1f8] sm:$0xf] %v2440
        %2697 = vst [vmem:[%s273 + $0x1fc] sm:$0xf] %v2441
        %s2698 = sand.u32 %s148, 1
        %s2699 = scalar_lea.sflag [#allocation4], %s2698
        %s2700 = sand.u32 %s148, 1
        %s2701 = smul.addr %s2700, 512
        %s2702 = scalar_lea.vmem [#allocation7], %s2701
        // Predicated region
        $region45: #{tpu_custom_call.1} parent=35 // pred_check
          %p2703 = pneg %p158
        $region46: #{tpu_custom_call.1} parent=35 // pred_check_branch
          %2705 = sbr.rel (%p2703) target = $region48
        $region47: #{tpu_custom_call.1} parent=35 // pred_region
          %s2706 = smul.u32 128, %s26
          %s2708 = ssub.s32 8192, 8192
          %2709 = vsyncadd %s2699, %s2708
          %s2710 = sadd.s32 %s27, %s2706
          %s2711 = smul.addr %s2710, 64
          %s2712 = scalar_lea.hbm %s4, %s2711
          %s2713 = sshll.u32 %s2702, 4
          %s2714 = int_to_ptr.vmem [resolvable:$true] %s2713
          %2719 = dma.vmem_to_hbm [thread:$0]  %s2714, 8192, %s2712, %s2699, 64, 64, 4
        $region48: #{tpu_custom_call.1} parent=35 // pred_fallthru
          _
      $region36: #{tpu_custom_call.1} parent=5 // pred_fallthru
        _
      %p2720 = scmp.le.s32.totalorder 2, %s17
      // Predicated region
      $region49: #{tpu_custom_call.1} parent=5 // pred_check
        %p2721 = pneg %p2720
      $region50: #{tpu_custom_call.1} parent=5 // pred_check_branch
        %2723 = sbr.rel (%p2721) target = $region52
      $region51: #{tpu_custom_call.1} parent=5 // pred_region
        %s2724 = ssub.s32 %s17, 2
        // Predicated region
        $region53: #{tpu_custom_call.1} parent=51 // pred_check
          %p2725 = pneg %p164
        $region54: #{tpu_custom_call.1} parent=51 // pred_check_branch
          %2727 = sbr.rel (%p2725) target = $region56
        $region55: #{tpu_custom_call.1} parent=51 // pred_region
          %s2728 = sand.u32 %s149, 1
          %s2729 = scalar_lea.sflag [#allocation4], %s2728
          %s2730 = sand.u32 %s149, 1
          %s2731 = smul.addr %s2730, 512
          %s2732 = scalar_lea.vmem [#allocation7], %s2731
          %2733 = dma.done %s2729, 8192
        $region56: #{tpu_custom_call.1} parent=51 // pred_fallthru
          _
      $region52: #{tpu_custom_call.1} parent=5 // pred_fallthru
        _
    $region6: #{tpu_custom_call.1} parent=1 // loop_footer
      %s21 = sadd.s32 1, %s17
    $region7: #{tpu_custom_call.1} parent=1 // loop_footer_branch
      %16 = sbr.rel target = $region3
    $region8: #{tpu_custom_call.1} parent=1 // loop_exit
      _
    %2734 = vsyncpa [#allocation3], 1
    %s2735 = scalar_lea.sflag [#allocation3], 1
    %2736 = vsyncpa %s2735, 1
    %2737 = vsyncpa [#allocation6], 1
    %2738 = vsyncpa [#allocation4], 1
    %s2739 = scalar_lea.sflag [#allocation4], 1
    %2740 = vsyncpa %s2739, 1

</llo_original>
